<compile_context>
chip_gen: v6e
topology: v6e:2x2x1
jax: 0.10.0
libtpu: 0.0.40
codegen_flags: <defaults>
</compile_context>

<pallas_src>
import functools

import jax
import jax.numpy as jnp
from jax import lax
from jax.experimental import pallas as pl
from jax.experimental.pallas import tpu as pltpu


def _round_up(x, m):
    return ((x + m - 1) // m) * m


def _k_tiling(din):
    """Pick (din_pad, tk): one fat K step for small din, 2048-chunks otherwise."""
    TK_MAX = 2048
    if din <= TK_MAX:
        din_pad = _round_up(din, 256)
        return din_pad, din_pad            # grid = (1,)
    return _round_up(din, TK_MAX), TK_MAX


# ---------------------------------------------------------------------------
# Fused kernel: backbone matmul (K-reduction grid) + prototypes + -cdist
# ---------------------------------------------------------------------------
def _fused_proto_kernel(xs_ref, xq_ref, w_ref, b_ref, pwt_ref, o_ref,
                        zs_acc, zq_acc):
    """Grid axis 0 iterates over K chunks of the flattened image ("arbitrary").

    xs_ref : (NS_PAD, TK)        bf16  support rows
    xq_ref : (NQ_PAD, TK)        bf16  query rows
    w_ref  : (TK, FEAT)          bf16  (FEAT not padded)
    b_ref  : (1, FEAT)           f32
    pwt_ref: (NWAY_PAD, NS_PAD)  f32   per-class mean weights (one-hot / count)^T
    o_ref  : (NQ_PAD, NWAY_PAD)  f32   scores = -cdist(z_query, prototypes)
    zs_acc : (NS_PAD, FEAT)      f32   VMEM accumulator (support embeddings)
    zq_acc : (NQ_PAD, FEAT)      f32   VMEM accumulator (query embeddings)
    """
    k = pl.program_id(0)

    @pl.when(k == 0)
    def _():
        zs_acc[...] = jnp.zeros_like(zs_acc)
        zq_acc[...] = jnp.zeros_like(zq_acc)

    # Backbone matmul chunks: bf16 x bf16 -> f32 accumulation on the MXU.
    zs_acc[...] += jnp.dot(xs_ref[...], w_ref[...],
                           preferred_element_type=jnp.float32)
    zq_acc[...] += jnp.dot(xq_ref[...], w_ref[...],
                           preferred_element_type=jnp.float32)

    @pl.when(k == pl.num_programs(0) - 1)
    def _():
        b = b_ref[...]                                       # (1, FEAT)
        z_s = jnp.maximum(zs_acc[...] + b, 0.0)              # (NS_PAD, FEAT)
        z_q = jnp.maximum(zq_acc[...] + b, 0.0)              # (NQ_PAD, FEAT)

        # prototypes = pw_t @ z_s -> (NWAY_PAD, FEAT); the divide-by-count is
        # folded into pw_t, so no labels / divide inside the kernel.
        protos = jnp.dot(pwt_ref[...], z_s,
                         preferred_element_type=jnp.float32)

        # cross[q, c] = z_q[q] . protos[c]   (trans_b-style contraction)
        cross = lax.dot_general(z_q, protos, (((1,), (1,)), ((), ())),
                                preferred_element_type=jnp.float32)
        # (NQ_PAD, NWAY_PAD)

        sq_q = jnp.sum(z_q * z_q, axis=1, keepdims=True)     # (NQ_PAD, 1)
        # ||p||^2 as a lane-dense row via a tiny trans_b matvec (avoids a
        # sublane->lane relayout of a reduction result).
        pp = protos * protos                                  # (NWAY_PAD, FEAT)
        ones_row = jnp.ones((1, pp.shape[1]), jnp.float32)
        sq_p = lax.dot_general(ones_row, pp, (((1,), (1,)), ((), ())),
                               preferred_element_type=jnp.float32)
        # (1, NWAY_PAD)

        d2 = jnp.maximum(sq_q + sq_p - 2.0 * cross, 0.0)
        o_ref[...] = -jnp.sqrt(d2)                            # torch.cdist, p=2


# ---------------------------------------------------------------------------
# One-time parameter prep (hoisted out of the per-episode path)
# ---------------------------------------------------------------------------
def prepare_backbone_params(w, b):
    """Pad+cast the backbone weights ONCE; reuse across episodes."""
    din, feat = w.shape
    din_pad, _ = _k_tiling(din)
    w_pad = jnp.pad(w.astype(jnp.bfloat16), ((0, din_pad - din), (0, 0)))
    b_row = jnp.asarray(b, jnp.float32).reshape(1, feat)
    return w_pad, b_row


# ---------------------------------------------------------------------------
# Wrapper (jit-able; n_way is static)
# ---------------------------------------------------------------------------
@functools.partial(jax.jit, static_argnames=("n_way",))
def prototypical_forward(support_images, support_labels, query_images,
                         w_pad, b_row, *, n_way):
    ns = support_images.shape[0]
    nq = query_images.shape[0]
    din = 1
    for d in support_images.shape[1:]:
        din *= int(d)
    feat = w_pad.shape[1]

    din_pad, tk = _k_tiling(din)
    assert w_pad.shape[0] == din_pad, "w_pad must come from prepare_backbone_params"

    nway_pad = _round_up(max(n_way, 128), 128)     # lane-dense score output
    ns_pad = _round_up(max(ns, 16), 16)            # bf16 sublane packing
    nq_pad = _round_up(max(nq, 16), 16)

    # Flatten + cast to bf16 directly (no f32 padded intermediate).
    x_s = jnp.pad(support_images.reshape(ns, -1).astype(jnp.bfloat16),
                  ((0, ns_pad - ns), (0, din_pad - din)))
    x_q = jnp.pad(query_images.reshape(nq, -1).astype(jnp.bfloat16),
                  ((0, nq_pad - nq), (0, din_pad - din)))

    # Per-class mean as a transposed weight matrix:
    # pw_t[c, s] = 1{label_s == c} / count_c.  (Labels in {0..n_way-1}, matching
    # the PyTorch module's range(n_way).)  Empty class -> NaN, same as torch.
    labels = support_labels.astype(jnp.int32)
    onehot_t = (jnp.arange(n_way)[:, None] == labels[None, :]).astype(jnp.float32)
    counts = jnp.sum(onehot_t, axis=1, keepdims=True)
    pw_t = jnp.zeros((nway_pad, ns_pad), jnp.float32).at[:n_way, :ns].set(
        onehot_t / counts)

    nk = din_pad // tk

    # VMEM budget (double-buffered bf16 inputs + f32 accumulators + small tiles).
    est = (2 * ((ns_pad + nq_pad) * tk + tk * feat) * 2
           + (ns_pad + nq_pad) * feat * 4
           + 2 * nq_pad * nway_pad * 4
           + 2 * nway_pad * ns_pad * 4 + 2 * feat * 4)
    vmem_limit = int(min(max(est + (4 << 20), 32 << 20), 64 << 20))

    scores_pad = pl.pallas_call(
        _fused_proto_kernel,
        out_shape=jax.ShapeDtypeStruct((nq_pad, nway_pad), jnp.float32),
        grid=(nk,),
        in_specs=[
            pl.BlockSpec((ns_pad, tk), lambda k: (0, k)),        # support chunk
            pl.BlockSpec((nq_pad, tk), lambda k: (0, k)),        # query chunk
            pl.BlockSpec((tk, feat), lambda k: (k, 0)),          # W chunk (unpadded feat)
            pl.BlockSpec((1, feat), lambda k: (0, 0)),           # bias
            pl.BlockSpec((nway_pad, ns_pad), lambda k: (0, 0)),  # proto weights^T
        ],
        out_specs=pl.BlockSpec((nq_pad, nway_pad), lambda k: (0, 0)),
        scratch_shapes=[pltpu.VMEM((ns_pad, feat), jnp.float32),
                        pltpu.VMEM((nq_pad, feat), jnp.float32)],
        compiler_params=pltpu.CompilerParams(
            dimension_semantics=("arbitrary",),
            vmem_limit_bytes=vmem_limit),
    )(x_s, x_q, w_pad, b_row, pw_t)

    return scores_pad[:nq, :n_way]


# ---------------------------------------------------------------------------
# Plain-JAX reference (same bf16 backbone matmul) for validation
# ---------------------------------------------------------------------------
def reference_forward(support_images, support_labels, query_images, w, b, n_way):
    ns = support_images.shape[0]
    nq = query_images.shape[0]
    x_s = support_images.reshape(ns, -1).astype(jnp.bfloat16)
    x_q = query_images.reshape(nq, -1).astype(jnp.bfloat16)
    w_b = w.astype(jnp.bfloat16)
    b2 = b.reshape(1, -1).astype(jnp.float32)
    z_s = jnp.maximum(
        jnp.dot(x_s, w_b, preferred_element_type=jnp.float32) + b2, 0.0)
    z_q = jnp.maximum(
        jnp.dot(x_q, w_b, preferred_element_type=jnp.float32) + b2, 0.0)
    protos = []
    for c in range(n_way):
        m = (support_labels == c).astype(jnp.float32)[:, None]
        protos.append(jnp.sum(z_s * m, axis=0) / jnp.sum(m))
    z_proto = jnp.stack(protos, axis=0)
    diff = z_q[:, None, :] - z_proto[None, :, :]
    dists = jnp.sqrt(jnp.sum(diff * diff, axis=-1))
    return -dists


if __name__ == "__main__":
    key = jax.random.PRNGKey(0)
    k1, k2, k3, k4 = jax.random.split(key, 4)

    # few-shot episode: 2-way, 4-shot, 3 queries per class
    N_WAY, N_SHOT, N_QUERY = 2, 4, 3
    C, H, W = 4, 16, 16
    FEAT = 32
    n_support = N_WAY * N_SHOT    # 8
    n_query = N_WAY * N_QUERY     # 6
    din = C * H * W               # 1024

    support_images = jax.random.normal(k1, (n_support, C, H, W), jnp.float32)
    query_images = jax.random.normal(k2, (n_query, C, H, W), jnp.float32)
    support_labels = jnp.array([0, 0, 0, 0, 1, 1, 1, 1], dtype=jnp.int32)

    # deterministic synthetic backbone parameters (Linear(din -> FEAT))
    w_param = jax.random.normal(k3, (din, FEAT), jnp.float32) / jnp.sqrt(float(din))
    b_param = 0.01 * jax.random.normal(k4, (1, FEAT), jnp.float32)

    # One-time weight prep (hoisted out of the per-episode path).
    w_pad, b_row = prepare_backbone_params(w_param, b_param)
    w_pad, b_row = jax.block_until_ready((w_pad, b_row))

    # n_way = len(torch.unique(support_labels)) -- host-side once, static arg.
    n_way = int(jnp.unique(support_labels).shape[0])

    scores = prototypical_forward(support_images, support_labels, query_images,
                                  w_pad, b_row, n_way=n_way)
    scores = jax.block_until_ready(scores)

    ref = reference_forward(support_images, support_labels, query_images,
                            w_param, b_param, n_way)
    assert scores.shape == (n_query, n_way)
    max_err = float(jnp.max(jnp.abs(scores - ref)))
    assert jnp.allclose(scores, ref, rtol=1e-3, atol=1e-3), (
        f"mismatch: max err {max_err}")

    print("KERNEL_OK")
</pallas_src>

<mosaic_0001>
module attributes {stable_mosaic.version = 11 : i64} {
  func.func @_fused_proto_kernel(%arg0: i32, %arg1: memref<16x1024xbf16, #tpu.memory_space<vmem>>, %arg2: memref<16x1024xbf16, #tpu.memory_space<vmem>>, %arg3: memref<1024x32xbf16, #tpu.memory_space<vmem>>, %arg4: memref<1x32xf32, #tpu.memory_space<vmem>>, %arg5: memref<128x16xf32, #tpu.memory_space<vmem>>, %arg6: memref<16x128xf32, #tpu.memory_space<vmem>>, %arg7: memref<16x32xf32, #tpu.memory_space<vmem>>, %arg8: memref<16x32xf32, #tpu.memory_space<vmem>>) attributes {dimension_semantics = [#tpu.dimension_semantics<arbitrary>], iteration_bounds = array<i64: 1>, scalar_prefetch = 0 : i64, scratch_operands = 2 : i64, tpu.core_type = #tpu.core_type<tc>, window_params = [{transform_indices = @transform_0, window_bounds = array<i64: 16, 1024>}, {transform_indices = @transform_1, window_bounds = array<i64: 16, 1024>}, {transform_indices = @transform_2, window_bounds = array<i64: 1024, 32>}, {pipeline_mode = #tpu.pipeline_mode<synchronous>, transform_indices = @transform_3, window_bounds = array<i64: 1, 32>}, {pipeline_mode = #tpu.pipeline_mode<synchronous>, transform_indices = @transform_4, window_bounds = array<i64: 128, 16>}, {pipeline_mode = #tpu.pipeline_mode<synchronous>, transform_indices = @transform_5, window_bounds = array<i64: 16, 128>}]} {
    %c0_i32 = arith.constant 0 : i32
    %0 = arith.cmpi eq, %arg0, %c0_i32 : i32
    %1 = arith.extui %0 : i1 to i32
    %c0_i32_0 = arith.constant 0 : i32
    %2 = arith.cmpi ne, %1, %c0_i32_0 : i32
    scf.if %2 {
      %cst_19 = arith.constant 0.000000e+00 : f32
      %18 = vector.broadcast %cst_19 : f32 to vector<16x32xf32>
      %c0_20 = arith.constant 0 : index
      %c0_21 = arith.constant 0 : index
      %19 = vector.load %arg7[%c0_20, %c0_21] : memref<16x32xf32, #tpu.memory_space<vmem>>, vector<16x32xf32>
      tpu.vector_store %arg7[%c0_20, %c0_21], %18 {strides = array<i32>} : memref<16x32xf32, #tpu.memory_space<vmem>>, vector<16x32xf32>,
      %cst_22 = arith.constant 0.000000e+00 : f32
      %20 = vector.broadcast %cst_22 : f32 to vector<16x32xf32>
      %c0_23 = arith.constant 0 : index
      %c0_24 = arith.constant 0 : index
      %21 = vector.load %arg8[%c0_23, %c0_24] : memref<16x32xf32, #tpu.memory_space<vmem>>, vector<16x32xf32>
      tpu.vector_store %arg8[%c0_23, %c0_24], %20 {strides = array<i32>} : memref<16x32xf32, #tpu.memory_space<vmem>>, vector<16x32xf32>,
    } else {
    }
    %c0 = arith.constant 0 : index
    %c0_1 = arith.constant 0 : index
    %3 = vector.load %arg7[%c0, %c0_1] : memref<16x32xf32, #tpu.memory_space<vmem>>, vector<16x32xf32>
    %c0_2 = arith.constant 0 : index
    %c0_3 = arith.constant 0 : index
    %4 = vector.load %arg1[%c0_2, %c0_3] : memref<16x1024xbf16, #tpu.memory_space<vmem>>, vector<16x1024xbf16>
    %c0_4 = arith.constant 0 : index
    %c0_5 = arith.constant 0 : index
    %5 = vector.load %arg3[%c0_4, %c0_5] : memref<1024x32xbf16, #tpu.memory_space<vmem>>, vector<1024x32xbf16>
    %cst = arith.constant dense<0.000000e+00> : vector<16x32xf32>
    %6 = tpu.matmul %4, %5, %cst {dimension_numbers = #tpu.dot_dimension_numbers<[1], [0], [0], [1], [0, 0, 1, 1], [], []>} : vector<16x1024xbf16>, vector<1024x32xbf16>, vector<16x32xf32> -> vector<16x32xf32>
    %7 = arith.addf %3, %6 : vector<16x32xf32>
    %c0_6 = arith.constant 0 : index
    %c0_7 = arith.constant 0 : index
    %8 = vector.load %arg7[%c0_6, %c0_7] : memref<16x32xf32, #tpu.memory_space<vmem>>, vector<16x32xf32>
    tpu.vector_store %arg7[%c0_6, %c0_7], %7 {strides = array<i32>} : memref<16x32xf32, #tpu.memory_space<vmem>>, vector<16x32xf32>,
    %c0_8 = arith.constant 0 : index
    %c0_9 = arith.constant 0 : index
    %9 = vector.load %arg8[%c0_8, %c0_9] : memref<16x32xf32, #tpu.memory_space<vmem>>, vector<16x32xf32>
    %c0_10 = arith.constant 0 : index
    %c0_11 = arith.constant 0 : index
    %10 = vector.load %arg2[%c0_10, %c0_11] : memref<16x1024xbf16, #tpu.memory_space<vmem>>, vector<16x1024xbf16>
    %c0_12 = arith.constant 0 : index
    %c0_13 = arith.constant 0 : index
    %11 = vector.load %arg3[%c0_12, %c0_13] : memref<1024x32xbf16, #tpu.memory_space<vmem>>, vector<1024x32xbf16>
    %cst_14 = arith.constant dense<0.000000e+00> : vector<16x32xf32>
    %12 = tpu.matmul %10, %11, %cst_14 {dimension_numbers = #tpu.dot_dimension_numbers<[1], [0], [0], [1], [0, 0, 1, 1], [], []>} : vector<16x1024xbf16>, vector<1024x32xbf16>, vector<16x32xf32> -> vector<16x32xf32>
    %13 = arith.addf %9, %12 : vector<16x32xf32>
    %c0_15 = arith.constant 0 : index
    %c0_16 = arith.constant 0 : index
    %14 = vector.load %arg8[%c0_15, %c0_16] : memref<16x32xf32, #tpu.memory_space<vmem>>, vector<16x32xf32>
    tpu.vector_store %arg8[%c0_15, %c0_16], %13 {strides = array<i32>} : memref<16x32xf32, #tpu.memory_space<vmem>>, vector<16x32xf32>,
    %c0_i32_17 = arith.constant 0 : i32
    %15 = arith.cmpi eq, %arg0, %c0_i32_17 : i32
    %16 = arith.extui %15 : i1 to i32
    %c0_i32_18 = arith.constant 0 : i32
    %17 = arith.cmpi ne, %16, %c0_i32_18 : i32
    scf.if %17 {
      %c0_19 = arith.constant 0 : index
      %c0_20 = arith.constant 0 : index
      %18 = vector.load %arg4[%c0_19, %c0_20] : memref<1x32xf32, #tpu.memory_space<vmem>>, vector<1x32xf32>
      %c0_21 = arith.constant 0 : index
      %c0_22 = arith.constant 0 : index
      %19 = vector.load %arg7[%c0_21, %c0_22] : memref<16x32xf32, #tpu.memory_space<vmem>>, vector<16x32xf32>
      %20 = vector.broadcast %18 : vector<1x32xf32> to vector<16x32xf32>
      %21 = arith.addf %19, %20 : vector<16x32xf32>
      %cst_23 = arith.constant 0.000000e+00 : f32
      %22 = vector.broadcast %cst_23 : f32 to vector<16x32xf32>
      %23 = arith.maximumf %21, %22 : vector<16x32xf32>
      %c0_24 = arith.constant 0 : index
      %c0_25 = arith.constant 0 : index
      %24 = vector.load %arg8[%c0_24, %c0_25] : memref<16x32xf32, #tpu.memory_space<vmem>>, vector<16x32xf32>
      %25 = vector.broadcast %18 : vector<1x32xf32> to vector<16x32xf32>
      %26 = arith.addf %24, %25 : vector<16x32xf32>
      %cst_26 = arith.constant 0.000000e+00 : f32
      %27 = vector.broadcast %cst_26 : f32 to vector<16x32xf32>
      %28 = arith.maximumf %26, %27 : vector<16x32xf32>
      %c0_27 = arith.constant 0 : index
      %c0_28 = arith.constant 0 : index
      %29 = vector.load %arg5[%c0_27, %c0_28] : memref<128x16xf32, #tpu.memory_space<vmem>>, vector<128x16xf32>
      %cst_29 = arith.constant dense<0.000000e+00> : vector<128x32xf32>
      %30 = tpu.matmul %29, %23, %cst_29 {dimension_numbers = #tpu.dot_dimension_numbers<[1], [0], [0], [1], [0, 0, 1, 1], [], []>} : vector<128x16xf32>, vector<16x32xf32>, vector<128x32xf32> -> vector<128x32xf32>
      %cst_30 = arith.constant dense<0.000000e+00> : vector<16x128xf32>
      %31 = tpu.matmul %28, %30, %cst_30 {dimension_numbers = #tpu.dot_dimension_numbers<[1], [1], [0], [0], [0, 0, 1, 0], [], []>} : vector<16x32xf32>, vector<128x32xf32>, vector<16x128xf32> -> vector<16x128xf32>
      %32 = arith.mulf %28, %28 : vector<16x32xf32>
      %cst_31 = arith.constant dense<0.000000e+00> : vector<16xf32>
      %33 = vector.multi_reduction <add>, %32, %cst_31 [1] : vector<16x32xf32> to vector<16xf32>
      %34 = vector.shape_cast %33 : vector<16xf32> to vector<16x1xf32>
      %35 = arith.mulf %30, %30 : vector<128x32xf32>
      %cst_32 = arith.constant 1.000000e+00 : f32
      %36 = vector.broadcast %cst_32 : f32 to vector<1x32xf32>
      %cst_33 = arith.constant dense<0.000000e+00> : vector<1x128xf32>
      %37 = tpu.matmul %36, %35, %cst_33 {dimension_numbers = #tpu.dot_dimension_numbers<[1], [1], [0], [0], [0, 0, 1, 0], [], []>} : vector<1x32xf32>, vector<128x32xf32>, vector<1x128xf32> -> vector<1x128xf32>
      %38 = vector.broadcast %34 : vector<16x1xf32> to vector<16x128xf32>
      %39 = vector.broadcast %37 : vector<1x128xf32> to vector<16x128xf32>
      %40 = arith.addf %38, %39 : vector<16x128xf32>
      %cst_34 = arith.constant 2.000000e+00 : f32
      %41 = vector.broadcast %cst_34 : f32 to vector<16x128xf32>
      %42 = arith.mulf %41, %31 : vector<16x128xf32>
      %43 = arith.subf %40, %42 : vector<16x128xf32>
      %cst_35 = arith.constant 0.000000e+00 : f32
      %44 = vector.broadcast %cst_35 : f32 to vector<16x128xf32>
      %45 = arith.maximumf %43, %44 : vector<16x128xf32>
      %46 = math.sqrt %45 : vector<16x128xf32>
      %cst_36 = arith.constant 0.000000e+00 : f32
      %47 = vector.broadcast %cst_36 : f32 to vector<16x128xf32>
      %48 = arith.subf %47, %46 : vector<16x128xf32>
      %c0_37 = arith.constant 0 : index
      %c0_38 = arith.constant 0 : index
      %49 = vector.load %arg6[%c0_37, %c0_38] : memref<16x128xf32, #tpu.memory_space<vmem>>, vector<16x128xf32>
      tpu.vector_store %arg6[%c0_37, %c0_38], %48 {strides = array<i32>} : memref<16x128xf32, #tpu.memory_space<vmem>>, vector<16x128xf32>,
    } else {
    }
    return
  }
  func.func @transform_0(%arg0: i32) -> (i32, i32) {
    %c0_i32 = arith.constant 0 : i32
    %c0_i32_0 = arith.constant 0 : i32
    return %c0_i32, %arg0 : i32, i32
  }
  func.func @transform_1(%arg0: i32) -> (i32, i32) {
    %c0_i32 = arith.constant 0 : i32
    %c0_i32_0 = arith.constant 0 : i32
    return %c0_i32, %arg0 : i32, i32
  }
  func.func @transform_2(%arg0: i32) -> (i32, i32) {
    %c0_i32 = arith.constant 0 : i32
    %c0_i32_0 = arith.constant 0 : i32
    return %arg0, %c0_i32 : i32, i32
  }
  func.func @transform_3(%arg0: i32) -> (i32, i32) {
    %c0_i32 = arith.constant 0 : i32
    %c0_i32_0 = arith.constant 0 : i32
    %c0_i32_1 = arith.constant 0 : i32
    return %c0_i32, %c0_i32_0 : i32, i32
  }
  func.func @transform_4(%arg0: i32) -> (i32, i32) {
    %c0_i32 = arith.constant 0 : i32
    %c0_i32_0 = arith.constant 0 : i32
    %c0_i32_1 = arith.constant 0 : i32
    return %c0_i32, %c0_i32_0 : i32, i32
  }
  func.func @transform_5(%arg0: i32) -> (i32, i32) {
    %c0_i32 = arith.constant 0 : i32
    %c0_i32_0 = arith.constant 0 : i32
    %c0_i32_1 = arith.constant 0 : i32
    return %c0_i32, %c0_i32_0 : i32, i32
  }
}

</mosaic_0001>

<llo_original>
// kernel: prototypical_forward.1
$region0: #{prototypical_forward.1}
  #allocation0 [shape = 'u32[]', space=smem, size = 0x4, offset = 0x4, fixed_abs, tag = 'smem constant byte address 0x4 - core index']
  #allocation1 [shape = 'u32[144,128]{1,0:T(1,128)}', space=vmem, size = 0x12000, scoped, tag = 'internal scratch']
  #allocation2 [shape = 'f32[16,32]{1,0:T(8,128)}', space=vmem, size = 0x2000, scoped, tag = 'scratch operand']
  #allocation3 [shape = 'f32[16,32]{1,0:T(8,128)}', space=vmem, size = 0x2000, scoped, tag = 'scratch operand']
  %s0 = inlined_call_operand.vmem [shape: bf16[16,1024], index: 0, kind: input, shape index: {}]
  %s1 = inlined_call_operand.vmem [shape: bf16[16,1024], index: 1, kind: input, shape index: {}]
  %s2 = inlined_call_operand.vmem [shape: bf16[1024,32], index: 2, kind: input, shape index: {}]
  %s3 = inlined_call_operand.vmem [shape: f32[1,32], index: 3, kind: input, shape index: {}]
  %s4 = inlined_call_operand.vmem [shape: f32[128,16], index: 4, kind: input, shape index: {}]
  %s5 = inlined_call_operand.vmem [shape: f32[16,128], index: 5, kind: output, shape index: {}]
  %s6 = sld [smem:[#allocation0]]
  $region38: #{prototypical_forward.1} parent=0
    _
  %s8 = ssub.s32 1, %s6
  %s9 = scalar_select 0, %s8, %s6
  // Predicated region
  $region2: #{prototypical_forward.1} parent=0 // pred_check
    _
  $region3: #{prototypical_forward.1} parent=0 // pred_check_branch
    %11 = sbr.rel (0) target = $region5
  $region4: #{prototypical_forward.1} parent=0 // pred_region
    _
  $region5: #{prototypical_forward.1} parent=0 // pred_fallthru
    _
  // Predicated region
  $region6: #{prototypical_forward.1} parent=0 // pred_check
    _
  $region7: #{prototypical_forward.1} parent=0 // pred_check_branch
    %13 = sbr.rel (0) target = $region9
  $region8: #{prototypical_forward.1} parent=0 // pred_region
    _
  $region9: #{prototypical_forward.1} parent=0 // pred_fallthru
    _
  // Predicated region
  $region10: #{prototypical_forward.1} parent=0 // pred_check
    _
  $region11: #{prototypical_forward.1} parent=0 // pred_check_branch
    %15 = sbr.rel (0) target = $region13
  $region12: #{prototypical_forward.1} parent=0 // pred_region
    _
  $region13: #{prototypical_forward.1} parent=0 // pred_fallthru
    _
  // Predicated region
  $region14: #{prototypical_forward.1} parent=0 // pred_check
    _
  $region15: #{prototypical_forward.1} parent=0 // pred_check_branch
    %17 = sbr.rel (0) target = $region17
  $region16: #{prototypical_forward.1} parent=0 // pred_region
    _
  $region17: #{prototypical_forward.1} parent=0 // pred_fallthru
    _
  // Predicated region
  $region18: #{prototypical_forward.1} parent=0 // pred_check
    _
  $region19: #{prototypical_forward.1} parent=0 // pred_check_branch
    %19 = sbr.rel (0) target = $region21
  $region20: #{prototypical_forward.1} parent=0 // pred_region
    _
  $region21: #{prototypical_forward.1} parent=0 // pred_fallthru
    _
  %p21 = scmp.eq.s32.totalorder 0, 0
  // Predicated region
  $region22: #{prototypical_forward.1} parent=0 // pred_check
    %p22 = pneg %p21
  $region23: #{prototypical_forward.1} parent=0 // pred_check_branch
    %24 = sbr.rel (%p22) target = $region25
  $region24: #{prototypical_forward.1} parent=0 // pred_region
    %vm25 = vcmask 261120
    %26 = vst.msk [vmem:[#allocation2] sm:$0xff] %vm25, 0.0
    %27 = vst.msk [vmem:[#allocation2 + $0x8] sm:$0xff] %vm25, 0.0
    %28 = vst.msk [vmem:[#allocation3] sm:$0xff] %vm25, 0.0
    %29 = vst.msk [vmem:[#allocation3 + $0x8] sm:$0xff] %vm25, 0.0
  $region25: #{prototypical_forward.1} parent=0 // pred_fallthru
    _
  %v30 = vld [vmem:[#allocation2] sm:$0xff]
  %v31 = vld [vmem:[#allocation2 + $0x8] sm:$0xff]
  %v32 = vld [vmem:[%s0] sm:$0xff]
  %v33 = vld [vmem:[%s0 + $0x8] sm:$0xff]
  %v34 = vld [vmem:[%s0 + $0x10] sm:$0xff]
  %v35 = vld [vmem:[%s0 + $0x18] sm:$0xff]
  %v36 = vld [vmem:[%s0 + $0x20] sm:$0xff]
  %v37 = vld [vmem:[%s0 + $0x28] sm:$0xff]
  %v38 = vld [vmem:[%s0 + $0x30] sm:$0xff]
  %v39 = vld [vmem:[%s0 + $0x38] sm:$0xff]
  %v40 = vld [vmem:[%s2] sm:$0xf]
  %v41 = vld [vmem:[%s2 + $0x4] sm:$0xf]
  %v42 = vld [vmem:[%s2 + $0x8] sm:$0xf]
  %v43 = vld [vmem:[%s2 + $0xc] sm:$0xf]
  %v44 = vld [vmem:[%s2 + $0x10] sm:$0xf]
  %v45 = vld [vmem:[%s2 + $0x14] sm:$0xf]
  %v46 = vld [vmem:[%s2 + $0x18] sm:$0xf]
  %v47 = vld [vmem:[%s2 + $0x1c] sm:$0xf]
  %v48 = vld [vmem:[%s2 + $0x20] sm:$0xf]
  %v49 = vld [vmem:[%s2 + $0x24] sm:$0xf]
  %v50 = vld [vmem:[%s2 + $0x28] sm:$0xf]
  %v51 = vld [vmem:[%s2 + $0x2c] sm:$0xf]
  %v52 = vld [vmem:[%s2 + $0x30] sm:$0xf]
  %v53 = vld [vmem:[%s2 + $0x34] sm:$0xf]
  %v54 = vld [vmem:[%s2 + $0x38] sm:$0xf]
  %v55 = vld [vmem:[%s2 + $0x3c] sm:$0xf]
  %v56 = vld [vmem:[%s2 + $0x40] sm:$0xf]
  %v57 = vld [vmem:[%s2 + $0x44] sm:$0xf]
  %v58 = vld [vmem:[%s2 + $0x48] sm:$0xf]
  %v59 = vld [vmem:[%s2 + $0x4c] sm:$0xf]
  %v60 = vld [vmem:[%s2 + $0x50] sm:$0xf]
  %v61 = vld [vmem:[%s2 + $0x54] sm:$0xf]
  %v62 = vld [vmem:[%s2 + $0x58] sm:$0xf]
  %v63 = vld [vmem:[%s2 + $0x5c] sm:$0xf]
  %v64 = vld [vmem:[%s2 + $0x60] sm:$0xf]
  %v65 = vld [vmem:[%s2 + $0x64] sm:$0xf]
  %v66 = vld [vmem:[%s2 + $0x68] sm:$0xf]
  %v67 = vld [vmem:[%s2 + $0x6c] sm:$0xf]
  %v68 = vld [vmem:[%s2 + $0x70] sm:$0xf]
  %v69 = vld [vmem:[%s2 + $0x74] sm:$0xf]
  %v70 = vld [vmem:[%s2 + $0x78] sm:$0xf]
  %v71 = vld [vmem:[%s2 + $0x7c] sm:$0xf]
  %v72 = vld [vmem:[%s2 + $0x80] sm:$0xf]
  %v73 = vld [vmem:[%s2 + $0x84] sm:$0xf]
  %v74 = vld [vmem:[%s2 + $0x88] sm:$0xf]
  %v75 = vld [vmem:[%s2 + $0x8c] sm:$0xf]
  %v76 = vld [vmem:[%s2 + $0x90] sm:$0xf]
  %v77 = vld [vmem:[%s2 + $0x94] sm:$0xf]
  %v78 = vld [vmem:[%s2 + $0x98] sm:$0xf]
  %v79 = vld [vmem:[%s2 + $0x9c] sm:$0xf]
  %v80 = vld [vmem:[%s2 + $0xa0] sm:$0xf]
  %v81 = vld [vmem:[%s2 + $0xa4] sm:$0xf]
  %v82 = vld [vmem:[%s2 + $0xa8] sm:$0xf]
  %v83 = vld [vmem:[%s2 + $0xac] sm:$0xf]
  %v84 = vld [vmem:[%s2 + $0xb0] sm:$0xf]
  %v85 = vld [vmem:[%s2 + $0xb4] sm:$0xf]
  %v86 = vld [vmem:[%s2 + $0xb8] sm:$0xf]
  %v87 = vld [vmem:[%s2 + $0xbc] sm:$0xf]
  %v88 = vld [vmem:[%s2 + $0xc0] sm:$0xf]
  %v89 = vld [vmem:[%s2 + $0xc4] sm:$0xf]
  %v90 = vld [vmem:[%s2 + $0xc8] sm:$0xf]
  %v91 = vld [vmem:[%s2 + $0xcc] sm:$0xf]
  %v92 = vld [vmem:[%s2 + $0xd0] sm:$0xf]
  %v93 = vld [vmem:[%s2 + $0xd4] sm:$0xf]
  %v94 = vld [vmem:[%s2 + $0xd8] sm:$0xf]
  %v95 = vld [vmem:[%s2 + $0xdc] sm:$0xf]
  %v96 = vld [vmem:[%s2 + $0xe0] sm:$0xf]
  %v97 = vld [vmem:[%s2 + $0xe4] sm:$0xf]
  %v98 = vld [vmem:[%s2 + $0xe8] sm:$0xf]
  %v99 = vld [vmem:[%s2 + $0xec] sm:$0xf]
  %v100 = vld [vmem:[%s2 + $0xf0] sm:$0xf]
  %v101 = vld [vmem:[%s2 + $0xf4] sm:$0xf]
  %v102 = vld [vmem:[%s2 + $0xf8] sm:$0xf]
  %v103 = vld [vmem:[%s2 + $0xfc] sm:$0xf]
  %v104 = vld [vmem:[%s2 + $0x100] sm:$0xf]
  %v105 = vld [vmem:[%s2 + $0x104] sm:$0xf]
  %v106 = vld [vmem:[%s2 + $0x108] sm:$0xf]
  %v107 = vld [vmem:[%s2 + $0x10c] sm:$0xf]
  %v108 = vld [vmem:[%s2 + $0x110] sm:$0xf]
  %v109 = vld [vmem:[%s2 + $0x114] sm:$0xf]
  %v110 = vld [vmem:[%s2 + $0x118] sm:$0xf]
  %v111 = vld [vmem:[%s2 + $0x11c] sm:$0xf]
  %v112 = vld [vmem:[%s2 + $0x120] sm:$0xf]
  %v113 = vld [vmem:[%s2 + $0x124] sm:$0xf]
  %v114 = vld [vmem:[%s2 + $0x128] sm:$0xf]
  %v115 = vld [vmem:[%s2 + $0x12c] sm:$0xf]
  %v116 = vld [vmem:[%s2 + $0x130] sm:$0xf]
  %v117 = vld [vmem:[%s2 + $0x134] sm:$0xf]
  %v118 = vld [vmem:[%s2 + $0x138] sm:$0xf]
  %v119 = vld [vmem:[%s2 + $0x13c] sm:$0xf]
  %v120 = vld [vmem:[%s2 + $0x140] sm:$0xf]
  %v121 = vld [vmem:[%s2 + $0x144] sm:$0xf]
  %v122 = vld [vmem:[%s2 + $0x148] sm:$0xf]
  %v123 = vld [vmem:[%s2 + $0x14c] sm:$0xf]
  %v124 = vld [vmem:[%s2 + $0x150] sm:$0xf]
  %v125 = vld [vmem:[%s2 + $0x154] sm:$0xf]
  %v126 = vld [vmem:[%s2 + $0x158] sm:$0xf]
  %v127 = vld [vmem:[%s2 + $0x15c] sm:$0xf]
  %v128 = vld [vmem:[%s2 + $0x160] sm:$0xf]
  %v129 = vld [vmem:[%s2 + $0x164] sm:$0xf]
  %v130 = vld [vmem:[%s2 + $0x168] sm:$0xf]
  %v131 = vld [vmem:[%s2 + $0x16c] sm:$0xf]
  %v132 = vld [vmem:[%s2 + $0x170] sm:$0xf]
  %v133 = vld [vmem:[%s2 + $0x174] sm:$0xf]
  %v134 = vld [vmem:[%s2 + $0x178] sm:$0xf]
  %v135 = vld [vmem:[%s2 + $0x17c] sm:$0xf]
  %v136 = vld [vmem:[%s2 + $0x180] sm:$0xf]
  %v137 = vld [vmem:[%s2 + $0x184] sm:$0xf]
  %v138 = vld [vmem:[%s2 + $0x188] sm:$0xf]
  %v139 = vld [vmem:[%s2 + $0x18c] sm:$0xf]
  %v140 = vld [vmem:[%s2 + $0x190] sm:$0xf]
  %v141 = vld [vmem:[%s2 + $0x194] sm:$0xf]
  %v142 = vld [vmem:[%s2 + $0x198] sm:$0xf]
  %v143 = vld [vmem:[%s2 + $0x19c] sm:$0xf]
  %v144 = vld [vmem:[%s2 + $0x1a0] sm:$0xf]
  %v145 = vld [vmem:[%s2 + $0x1a4] sm:$0xf]
  %v146 = vld [vmem:[%s2 + $0x1a8] sm:$0xf]
  %v147 = vld [vmem:[%s2 + $0x1ac] sm:$0xf]
  %v148 = vld [vmem:[%s2 + $0x1b0] sm:$0xf]
  %v149 = vld [vmem:[%s2 + $0x1b4] sm:$0xf]
  %v150 = vld [vmem:[%s2 + $0x1b8] sm:$0xf]
  %v151 = vld [vmem:[%s2 + $0x1bc] sm:$0xf]
  %v152 = vld [vmem:[%s2 + $0x1c0] sm:$0xf]
  %v153 = vld [vmem:[%s2 + $0x1c4] sm:$0xf]
  %v154 = vld [vmem:[%s2 + $0x1c8] sm:$0xf]
  %v155 = vld [vmem:[%s2 + $0x1cc] sm:$0xf]
  %v156 = vld [vmem:[%s2 + $0x1d0] sm:$0xf]
  %v157 = vld [vmem:[%s2 + $0x1d4] sm:$0xf]
  %v158 = vld [vmem:[%s2 + $0x1d8] sm:$0xf]
  %v159 = vld [vmem:[%s2 + $0x1dc] sm:$0xf]
  %v160 = vld [vmem:[%s2 + $0x1e0] sm:$0xf]
  %v161 = vld [vmem:[%s2 + $0x1e4] sm:$0xf]
  %v162 = vld [vmem:[%s2 + $0x1e8] sm:$0xf]
  %v163 = vld [vmem:[%s2 + $0x1ec] sm:$0xf]
  %v164 = vld [vmem:[%s2 + $0x1f0] sm:$0xf]
  %v165 = vld [vmem:[%s2 + $0x1f4] sm:$0xf]
  %v166 = vld [vmem:[%s2 + $0x1f8] sm:$0xf]
  %v167 = vld [vmem:[%s2 + $0x1fc] sm:$0xf]
  %v176 = vunpack.c.l.b16 %v32
  %v177 = vunpack.c.h.b16 %v32
  %v178 = vunpack.c.l.b16 %v33
  %v179 = vunpack.c.h.b16 %v33
  %v180 = vunpack.c.l.b16 %v34
  %v181 = vunpack.c.h.b16 %v34
  %v182 = vunpack.c.l.b16 %v35
  %v183 = vunpack.c.h.b16 %v35
  %v184 = vunpack.c.l.b16 %v36
  %v185 = vunpack.c.h.b16 %v36
  %v186 = vunpack.c.l.b16 %v37
  %v187 = vunpack.c.h.b16 %v37
  %v188 = vunpack.c.l.b16 %v38
  %v189 = vunpack.c.h.b16 %v38
  %v190 = vunpack.c.l.b16 %v39
  %v191 = vunpack.c.h.b16 %v39
  %v192 = vpack.c.b16 %v184, %v176
  %v193 = vpack.c.b16 %v185, %v177
  %v194 = vpack.c.b16 %v186, %v178
  %v195 = vpack.c.b16 %v187, %v179
  %v196 = vpack.c.b16 %v188, %v180
  %v197 = vpack.c.b16 %v189, %v181
  %v198 = vpack.c.b16 %v190, %v182
  %v199 = vpack.c.b16 %v191, %v183
  %v336 = vunpack.c.l.b16 %v40
  %v337 = vunpack.c.l.b16 %v41
  %v338 = vunpack.c.l.b16 %v42
  %v339 = vunpack.c.l.b16 %v43
  %v340 = vunpack.c.l.b16 %v44
  %v341 = vunpack.c.l.b16 %v45
  %v342 = vunpack.c.l.b16 %v46
  %v343 = vunpack.c.l.b16 %v47
  %v344 = vunpack.c.l.b16 %v48
  %v345 = vunpack.c.l.b16 %v49
  %v346 = vunpack.c.l.b16 %v50
  %v347 = vunpack.c.l.b16 %v51
  %v348 = vunpack.c.l.b16 %v52
  %v349 = vunpack.c.l.b16 %v53
  %v350 = vunpack.c.l.b16 %v54
  %v351 = vunpack.c.l.b16 %v55
  %v352 = vunpack.c.l.b16 %v56
  %v353 = vunpack.c.l.b16 %v57
  %v354 = vunpack.c.l.b16 %v58
  %v355 = vunpack.c.l.b16 %v59
  %v356 = vunpack.c.l.b16 %v60
  %v357 = vunpack.c.l.b16 %v61
  %v358 = vunpack.c.l.b16 %v62
  %v359 = vunpack.c.l.b16 %v63
  %v360 = vunpack.c.l.b16 %v64
  %v361 = vunpack.c.l.b16 %v65
  %v362 = vunpack.c.l.b16 %v66
  %v363 = vunpack.c.l.b16 %v67
  %v364 = vunpack.c.l.b16 %v68
  %v365 = vunpack.c.l.b16 %v69
  %v366 = vunpack.c.l.b16 %v70
  %v367 = vunpack.c.l.b16 %v71
  %v368 = vunpack.c.l.b16 %v72
  %v369 = vunpack.c.l.b16 %v73
  %v370 = vunpack.c.l.b16 %v74
  %v371 = vunpack.c.l.b16 %v75
  %v372 = vunpack.c.l.b16 %v76
  %v373 = vunpack.c.l.b16 %v77
  %v374 = vunpack.c.l.b16 %v78
  %v375 = vunpack.c.l.b16 %v79
  %v376 = vunpack.c.l.b16 %v80
  %v377 = vunpack.c.l.b16 %v81
  %v378 = vunpack.c.l.b16 %v82
  %v379 = vunpack.c.l.b16 %v83
  %v380 = vunpack.c.l.b16 %v84
  %v381 = vunpack.c.l.b16 %v85
  %v382 = vunpack.c.l.b16 %v86
  %v383 = vunpack.c.l.b16 %v87
  %v384 = vunpack.c.l.b16 %v88
  %v385 = vunpack.c.l.b16 %v89
  %v386 = vunpack.c.l.b16 %v90
  %v387 = vunpack.c.l.b16 %v91
  %v388 = vunpack.c.l.b16 %v92
  %v389 = vunpack.c.l.b16 %v93
  %v390 = vunpack.c.l.b16 %v94
  %v391 = vunpack.c.l.b16 %v95
  %v392 = vunpack.c.l.b16 %v96
  %v393 = vunpack.c.l.b16 %v97
  %v394 = vunpack.c.l.b16 %v98
  %v395 = vunpack.c.l.b16 %v99
  %v396 = vunpack.c.l.b16 %v100
  %v397 = vunpack.c.l.b16 %v101
  %v398 = vunpack.c.l.b16 %v102
  %v399 = vunpack.c.l.b16 %v103
  %v400 = vunpack.c.l.b16 %v104
  %v401 = vunpack.c.l.b16 %v105
  %v402 = vunpack.c.l.b16 %v106
  %v403 = vunpack.c.l.b16 %v107
  %v404 = vunpack.c.l.b16 %v108
  %v405 = vunpack.c.l.b16 %v109
  %v406 = vunpack.c.l.b16 %v110
  %v407 = vunpack.c.l.b16 %v111
  %v408 = vunpack.c.l.b16 %v112
  %v409 = vunpack.c.l.b16 %v113
  %v410 = vunpack.c.l.b16 %v114
  %v411 = vunpack.c.l.b16 %v115
  %v412 = vunpack.c.l.b16 %v116
  %v413 = vunpack.c.l.b16 %v117
  %v414 = vunpack.c.l.b16 %v118
  %v415 = vunpack.c.l.b16 %v119
  %v416 = vunpack.c.l.b16 %v120
  %v417 = vunpack.c.l.b16 %v121
  %v418 = vunpack.c.l.b16 %v122
  %v419 = vunpack.c.l.b16 %v123
  %v420 = vunpack.c.l.b16 %v124
  %v421 = vunpack.c.l.b16 %v125
  %v422 = vunpack.c.l.b16 %v126
  %v423 = vunpack.c.l.b16 %v127
  %v424 = vunpack.c.l.b16 %v128
  %v425 = vunpack.c.l.b16 %v129
  %v426 = vunpack.c.l.b16 %v130
  %v427 = vunpack.c.l.b16 %v131
  %v428 = vunpack.c.l.b16 %v132
  %v429 = vunpack.c.l.b16 %v133
  %v430 = vunpack.c.l.b16 %v134
  %v431 = vunpack.c.l.b16 %v135
  %v432 = vunpack.c.l.b16 %v136
  %v433 = vunpack.c.l.b16 %v137
  %v434 = vunpack.c.l.b16 %v138
  %v435 = vunpack.c.l.b16 %v139
  %v436 = vunpack.c.l.b16 %v140
  %v437 = vunpack.c.l.b16 %v141
  %v438 = vunpack.c.l.b16 %v142
  %v439 = vunpack.c.l.b16 %v143
  %v440 = vunpack.c.l.b16 %v144
  %v441 = vunpack.c.l.b16 %v145
  %v442 = vunpack.c.l.b16 %v146
  %v443 = vunpack.c.l.b16 %v147
  %v444 = vunpack.c.l.b16 %v148
  %v445 = vunpack.c.l.b16 %v149
  %v446 = vunpack.c.l.b16 %v150
  %v447 = vunpack.c.l.b16 %v151
  %v448 = vunpack.c.l.b16 %v152
  %v449 = vunpack.c.l.b16 %v153
  %v450 = vunpack.c.l.b16 %v154
  %v451 = vunpack.c.l.b16 %v155
  %v452 = vunpack.c.l.b16 %v156
  %v453 = vunpack.c.l.b16 %v157
  %v454 = vunpack.c.l.b16 %v158
  %v455 = vunpack.c.l.b16 %v159
  %v456 = vunpack.c.l.b16 %v160
  %v457 = vunpack.c.l.b16 %v161
  %v458 = vunpack.c.l.b16 %v162
  %v459 = vunpack.c.l.b16 %v163
  %v460 = vunpack.c.l.b16 %v164
  %v461 = vunpack.c.l.b16 %v165
  %v462 = vunpack.c.l.b16 %v166
  %v463 = vunpack.c.l.b16 %v167
  %v464 = vpack.c.b16 %v337, %v336
  %v465 = vpack.c.b16 %v339, %v338
  %v466 = vpack.c.b16 %v341, %v340
  %v467 = vpack.c.b16 %v343, %v342
  %v468 = vpack.c.b16 %v345, %v344
  %v469 = vpack.c.b16 %v347, %v346
  %v470 = vpack.c.b16 %v349, %v348
  %v471 = vpack.c.b16 %v351, %v350
  %v472 = vpack.c.b16 %v353, %v352
  %v473 = vpack.c.b16 %v355, %v354
  %v474 = vpack.c.b16 %v357, %v356
  %v475 = vpack.c.b16 %v359, %v358
  %v476 = vpack.c.b16 %v361, %v360
  %v477 = vpack.c.b16 %v363, %v362
  %v478 = vpack.c.b16 %v365, %v364
  %v479 = vpack.c.b16 %v367, %v366
  %v480 = vpack.c.b16 %v369, %v368
  %v481 = vpack.c.b16 %v371, %v370
  %v482 = vpack.c.b16 %v373, %v372
  %v483 = vpack.c.b16 %v375, %v374
  %v484 = vpack.c.b16 %v377, %v376
  %v485 = vpack.c.b16 %v379, %v378
  %v486 = vpack.c.b16 %v381, %v380
  %v487 = vpack.c.b16 %v383, %v382
  %v488 = vpack.c.b16 %v385, %v384
  %v489 = vpack.c.b16 %v387, %v386
  %v490 = vpack.c.b16 %v389, %v388
  %v491 = vpack.c.b16 %v391, %v390
  %v492 = vpack.c.b16 %v393, %v392
  %v493 = vpack.c.b16 %v395, %v394
  %v494 = vpack.c.b16 %v397, %v396
  %v495 = vpack.c.b16 %v399, %v398
  %v496 = vpack.c.b16 %v401, %v400
  %v497 = vpack.c.b16 %v403, %v402
  %v498 = vpack.c.b16 %v405, %v404
  %v499 = vpack.c.b16 %v407, %v406
  %v500 = vpack.c.b16 %v409, %v408
  %v501 = vpack.c.b16 %v411, %v410
  %v502 = vpack.c.b16 %v413, %v412
  %v503 = vpack.c.b16 %v415, %v414
  %v504 = vpack.c.b16 %v417, %v416
  %v505 = vpack.c.b16 %v419, %v418
  %v506 = vpack.c.b16 %v421, %v420
  %v507 = vpack.c.b16 %v423, %v422
  %v508 = vpack.c.b16 %v425, %v424
  %v509 = vpack.c.b16 %v427, %v426
  %v510 = vpack.c.b16 %v429, %v428
  %v511 = vpack.c.b16 %v431, %v430
  %v512 = vpack.c.b16 %v433, %v432
  %v513 = vpack.c.b16 %v435, %v434
  %v514 = vpack.c.b16 %v437, %v436
  %v515 = vpack.c.b16 %v439, %v438
  %v516 = vpack.c.b16 %v441, %v440
  %v517 = vpack.c.b16 %v443, %v442
  %v518 = vpack.c.b16 %v445, %v444
  %v519 = vpack.c.b16 %v447, %v446
  %v520 = vpack.c.b16 %v449, %v448
  %v521 = vpack.c.b16 %v451, %v450
  %v522 = vpack.c.b16 %v453, %v452
  %v523 = vpack.c.b16 %v455, %v454
  %v524 = vpack.c.b16 %v457, %v456
  %v525 = vpack.c.b16 %v459, %v458
  %v526 = vpack.c.b16 %v461, %v460
  %v527 = vpack.c.b16 %v463, %v462
  %592 = vmatprep.subr.bf16.mxu0 0
  %593 = vmatpush1.bf16.msra.mxu0 %v471
  %594 = vmatprep.subr.bf16.mxu0 0
  %595 = vmatpush1.bf16.msra.mxu0 %v470
  %596 = vmatprep.subr.bf16.mxu0 0
  %597 = vmatpush1.bf16.msra.mxu0 %v469
  %598 = vmatprep.subr.bf16.mxu0 0
  %599 = vmatpush1.bf16.msra.mxu0 %v468
  %600 = vmatprep.subr.bf16.mxu0 0
  %601 = vmatpush1.bf16.msra.mxu0 %v467
  %602 = vmatprep.subr.bf16.mxu0 0
  %603 = vmatpush1.bf16.msra.mxu0 %v466
  %604 = vmatprep.subr.bf16.mxu0 0
  %605 = vmatpush1.bf16.msra.mxu0 %v465
  %606 = vmatprep.subr.bf16.mxu0 0
  %607 = vmatpush1.bf16.msra.mxu0 %v464
  %608 = vmatprep.subr.bf16.mxu0 0
  %609 = vmatpush2.bf16.msra.mxu0 %v479
  %610 = vmatprep.subr.bf16.mxu0 0
  %611 = vmatpush2.bf16.msra.mxu0 %v478
  %612 = vmatprep.subr.bf16.mxu0 0
  %613 = vmatpush2.bf16.msra.mxu0 %v477
  %614 = vmatprep.subr.bf16.mxu0 0
  %615 = vmatpush2.bf16.msra.mxu0 %v476
  %616 = vmatprep.subr.bf16.mxu0 0
  %617 = vmatpush2.bf16.msra.mxu0 %v475
  %618 = vmatprep.subr.bf16.mxu0 0
  %619 = vmatpush2.bf16.msra.mxu0 %v474
  %620 = vmatprep.subr.bf16.mxu0 0
  %621 = vmatpush2.bf16.msra.mxu0 %v473
  %622 = vmatprep.subr.bf16.mxu0 0
  %623 = vmatpush2.bf16.msra.mxu0 %v472
  %624 = vmatprep.mubr.bf16.mxu0 %v193
  %625 = vmatmul.mubr.bf16.gmra.mxu0 %v192
  %v626 = vpop.f32.mrf.mxu0
  %v627 = vadd.f32 0.0, %v626
  %v628 = vpop.f32.mrf.mxu0
  %v629 = vpop.f32.mrf.mxu0
  %v630 = vadd.f32 0.0, %v629
  %v631 = vpop.f32.mrf.mxu0
  %632 = vdwg.mxu0
  %633 = vmatprep.subr.bf16.mxu0 0
  %634 = vmatpush1.bf16.msra.mxu0 %v487
  %635 = vmatprep.subr.bf16.mxu0 0
  %636 = vmatpush1.bf16.msra.mxu0 %v486
  %637 = vmatprep.subr.bf16.mxu0 0
  %638 = vmatpush1.bf16.msra.mxu0 %v485
  %639 = vmatprep.subr.bf16.mxu0 0
  %640 = vmatpush1.bf16.msra.mxu0 %v484
  %641 = vmatprep.subr.bf16.mxu0 0
  %642 = vmatpush1.bf16.msra.mxu0 %v483
  %643 = vmatprep.subr.bf16.mxu0 0
  %644 = vmatpush1.bf16.msra.mxu0 %v482
  %645 = vmatprep.subr.bf16.mxu0 0
  %646 = vmatpush1.bf16.msra.mxu0 %v481
  %647 = vmatprep.subr.bf16.mxu0 0
  %648 = vmatpush1.bf16.msra.mxu0 %v480
  %649 = vmatprep.subr.bf16.mxu0 0
  %650 = vmatpush2.bf16.msra.mxu0 %v495
  %651 = vmatprep.subr.bf16.mxu0 0
  %652 = vmatpush2.bf16.msra.mxu0 %v494
  %653 = vmatprep.subr.bf16.mxu0 0
  %654 = vmatpush2.bf16.msra.mxu0 %v493
  %655 = vmatprep.subr.bf16.mxu0 0
  %656 = vmatpush2.bf16.msra.mxu0 %v492
  %657 = vmatprep.subr.bf16.mxu0 0
  %658 = vmatpush2.bf16.msra.mxu0 %v491
  %659 = vmatprep.subr.bf16.mxu0 0
  %660 = vmatpush2.bf16.msra.mxu0 %v490
  %661 = vmatprep.subr.bf16.mxu0 0
  %662 = vmatpush2.bf16.msra.mxu0 %v489
  %663 = vmatprep.subr.bf16.mxu0 0
  %664 = vmatpush2.bf16.msra.mxu0 %v488
  %665 = vmatprep.mubr.bf16.mxu0 %v195
  %666 = vmatmul.mubr.bf16.gmra.mxu0 %v194
  %v667 = vpop.f32.mrf.mxu0
  %v668 = vadd.f32 %v627, %v667
  %v669 = vpop.f32.mrf.mxu0
  %v670 = vpop.f32.mrf.mxu0
  %v671 = vadd.f32 %v630, %v670
  %v672 = vpop.f32.mrf.mxu0
  %673 = vdwg.mxu0
  %674 = vmatprep.subr.bf16.mxu0 0
  %675 = vmatpush1.bf16.msra.mxu0 %v503
  %676 = vmatprep.subr.bf16.mxu0 0
  %677 = vmatpush1.bf16.msra.mxu0 %v502
  %678 = vmatprep.subr.bf16.mxu0 0
  %679 = vmatpush1.bf16.msra.mxu0 %v501
  %680 = vmatprep.subr.bf16.mxu0 0
  %681 = vmatpush1.bf16.msra.mxu0 %v500
  %682 = vmatprep.subr.bf16.mxu0 0
  %683 = vmatpush1.bf16.msra.mxu0 %v499
  %684 = vmatprep.subr.bf16.mxu0 0
  %685 = vmatpush1.bf16.msra.mxu0 %v498
  %686 = vmatprep.subr.bf16.mxu0 0
  %687 = vmatpush1.bf16.msra.mxu0 %v497
  %688 = vmatprep.subr.bf16.mxu0 0
  %689 = vmatpush1.bf16.msra.mxu0 %v496
  %690 = vmatprep.subr.bf16.mxu0 0
  %691 = vmatpush2.bf16.msra.mxu0 %v511
  %692 = vmatprep.subr.bf16.mxu0 0
  %693 = vmatpush2.bf16.msra.mxu0 %v510
  %694 = vmatprep.subr.bf16.mxu0 0
  %695 = vmatpush2.bf16.msra.mxu0 %v509
  %696 = vmatprep.subr.bf16.mxu0 0
  %697 = vmatpush2.bf16.msra.mxu0 %v508
  %698 = vmatprep.subr.bf16.mxu0 0
  %699 = vmatpush2.bf16.msra.mxu0 %v507
  %700 = vmatprep.subr.bf16.mxu0 0
  %701 = vmatpush2.bf16.msra.mxu0 %v506
  %702 = vmatprep.subr.bf16.mxu0 0
  %703 = vmatpush2.bf16.msra.mxu0 %v505
  %704 = vmatprep.subr.bf16.mxu0 0
  %705 = vmatpush2.bf16.msra.mxu0 %v504
  %706 = vmatprep.mubr.bf16.mxu0 %v197
  %707 = vmatmul.mubr.bf16.gmra.mxu0 %v196
  %v708 = vpop.f32.mrf.mxu0
  %v709 = vadd.f32 %v668, %v708
  %v710 = vpop.f32.mrf.mxu0
  %v711 = vpop.f32.mrf.mxu0
  %v712 = vadd.f32 %v671, %v711
  %v713 = vpop.f32.mrf.mxu0
  %714 = vdwg.mxu0
  %715 = vmatprep.subr.bf16.mxu0 0
  %716 = vmatpush1.bf16.msra.mxu0 %v519
  %717 = vmatprep.subr.bf16.mxu0 0
  %718 = vmatpush1.bf16.msra.mxu0 %v518
  %719 = vmatprep.subr.bf16.mxu0 0
  %720 = vmatpush1.bf16.msra.mxu0 %v517
  %721 = vmatprep.subr.bf16.mxu0 0
  %722 = vmatpush1.bf16.msra.mxu0 %v516
  %723 = vmatprep.subr.bf16.mxu0 0
  %724 = vmatpush1.bf16.msra.mxu0 %v515
  %725 = vmatprep.subr.bf16.mxu0 0
  %726 = vmatpush1.bf16.msra.mxu0 %v514
  %727 = vmatprep.subr.bf16.mxu0 0
  %728 = vmatpush1.bf16.msra.mxu0 %v513
  %729 = vmatprep.subr.bf16.mxu0 0
  %730 = vmatpush1.bf16.msra.mxu0 %v512
  %731 = vmatprep.subr.bf16.mxu0 0
  %732 = vmatpush2.bf16.msra.mxu0 %v527
  %733 = vmatprep.subr.bf16.mxu0 0
  %734 = vmatpush2.bf16.msra.mxu0 %v526
  %735 = vmatprep.subr.bf16.mxu0 0
  %736 = vmatpush2.bf16.msra.mxu0 %v525
  %737 = vmatprep.subr.bf16.mxu0 0
  %738 = vmatpush2.bf16.msra.mxu0 %v524
  %739 = vmatprep.subr.bf16.mxu0 0
  %740 = vmatpush2.bf16.msra.mxu0 %v523
  %741 = vmatprep.subr.bf16.mxu0 0
  %742 = vmatpush2.bf16.msra.mxu0 %v522
  %743 = vmatprep.subr.bf16.mxu0 0
  %744 = vmatpush2.bf16.msra.mxu0 %v521
  %745 = vmatprep.subr.bf16.mxu0 0
  %746 = vmatpush2.bf16.msra.mxu0 %v520
  %747 = vmatprep.mubr.bf16.mxu0 %v199
  %748 = vmatmul.mubr.bf16.gmra.mxu0 %v198
  %v749 = vpop.f32.mrf.mxu0
  %v750 = vadd.f32 %v709, %v749
  %v751 = vpop.f32.mrf.mxu0
  %v752 = vpop.f32.mrf.mxu0
  %v753 = vadd.f32 %v712, %v752
  %v754 = vpop.f32.mrf.mxu0
  %755 = vdwg.mxu0
  %v756 = vadd.f32 %v30, %v750
  %v757 = vadd.f32 %v31, %v753
  %vm758 = vcmask 261120
  %759 = vst.msk [vmem:[#allocation2] sm:$0xff] %vm758, %v756
  %760 = vst.msk [vmem:[#allocation2 + $0x8] sm:$0xff] %vm758, %v757
  %v761 = vld [vmem:[#allocation3] sm:$0xff]
  %v762 = vld [vmem:[#allocation3 + $0x8] sm:$0xff]
  %v763 = vld [vmem:[%s1] sm:$0xff]
  %v764 = vld [vmem:[%s1 + $0x8] sm:$0xff]
  %v765 = vld [vmem:[%s1 + $0x10] sm:$0xff]
  %v766 = vld [vmem:[%s1 + $0x18] sm:$0xff]
  %v767 = vld [vmem:[%s1 + $0x20] sm:$0xff]
  %v768 = vld [vmem:[%s1 + $0x28] sm:$0xff]
  %v769 = vld [vmem:[%s1 + $0x30] sm:$0xff]
  %v770 = vld [vmem:[%s1 + $0x38] sm:$0xff]
  %v771 = vld [vmem:[%s2] sm:$0xf]
  %v772 = vld [vmem:[%s2 + $0x4] sm:$0xf]
  %v773 = vld [vmem:[%s2 + $0x8] sm:$0xf]
  %v774 = vld [vmem:[%s2 + $0xc] sm:$0xf]
  %v775 = vld [vmem:[%s2 + $0x10] sm:$0xf]
  %v776 = vld [vmem:[%s2 + $0x14] sm:$0xf]
  %v777 = vld [vmem:[%s2 + $0x18] sm:$0xf]
  %v778 = vld [vmem:[%s2 + $0x1c] sm:$0xf]
  %v779 = vld [vmem:[%s2 + $0x20] sm:$0xf]
  %v780 = vld [vmem:[%s2 + $0x24] sm:$0xf]
  %v781 = vld [vmem:[%s2 + $0x28] sm:$0xf]
  %v782 = vld [vmem:[%s2 + $0x2c] sm:$0xf]
  %v783 = vld [vmem:[%s2 + $0x30] sm:$0xf]
  %v784 = vld [vmem:[%s2 + $0x34] sm:$0xf]
  %v785 = vld [vmem:[%s2 + $0x38] sm:$0xf]
  %v786 = vld [vmem:[%s2 + $0x3c] sm:$0xf]
  %v787 = vld [vmem:[%s2 + $0x40] sm:$0xf]
  %v788 = vld [vmem:[%s2 + $0x44] sm:$0xf]
  %v789 = vld [vmem:[%s2 + $0x48] sm:$0xf]
  %v790 = vld [vmem:[%s2 + $0x4c] sm:$0xf]
  %v791 = vld [vmem:[%s2 + $0x50] sm:$0xf]
  %v792 = vld [vmem:[%s2 + $0x54] sm:$0xf]
  %v793 = vld [vmem:[%s2 + $0x58] sm:$0xf]
  %v794 = vld [vmem:[%s2 + $0x5c] sm:$0xf]
  %v795 = vld [vmem:[%s2 + $0x60] sm:$0xf]
  %v796 = vld [vmem:[%s2 + $0x64] sm:$0xf]
  %v797 = vld [vmem:[%s2 + $0x68] sm:$0xf]
  %v798 = vld [vmem:[%s2 + $0x6c] sm:$0xf]
  %v799 = vld [vmem:[%s2 + $0x70] sm:$0xf]
  %v800 = vld [vmem:[%s2 + $0x74] sm:$0xf]
  %v801 = vld [vmem:[%s2 + $0x78] sm:$0xf]
  %v802 = vld [vmem:[%s2 + $0x7c] sm:$0xf]
  %v803 = vld [vmem:[%s2 + $0x80] sm:$0xf]
  %v804 = vld [vmem:[%s2 + $0x84] sm:$0xf]
  %v805 = vld [vmem:[%s2 + $0x88] sm:$0xf]
  %v806 = vld [vmem:[%s2 + $0x8c] sm:$0xf]
  %v807 = vld [vmem:[%s2 + $0x90] sm:$0xf]
  %v808 = vld [vmem:[%s2 + $0x94] sm:$0xf]
  %v809 = vld [vmem:[%s2 + $0x98] sm:$0xf]
  %v810 = vld [vmem:[%s2 + $0x9c] sm:$0xf]
  %v811 = vld [vmem:[%s2 + $0xa0] sm:$0xf]
  %v812 = vld [vmem:[%s2 + $0xa4] sm:$0xf]
  %v813 = vld [vmem:[%s2 + $0xa8] sm:$0xf]
  %v814 = vld [vmem:[%s2 + $0xac] sm:$0xf]
  %v815 = vld [vmem:[%s2 + $0xb0] sm:$0xf]
  %v816 = vld [vmem:[%s2 + $0xb4] sm:$0xf]
  %v817 = vld [vmem:[%s2 + $0xb8] sm:$0xf]
  %v818 = vld [vmem:[%s2 + $0xbc] sm:$0xf]
  %v819 = vld [vmem:[%s2 + $0xc0] sm:$0xf]
  %v820 = vld [vmem:[%s2 + $0xc4] sm:$0xf]
  %v821 = vld [vmem:[%s2 + $0xc8] sm:$0xf]
  %v822 = vld [vmem:[%s2 + $0xcc] sm:$0xf]
  %v823 = vld [vmem:[%s2 + $0xd0] sm:$0xf]
  %v824 = vld [vmem:[%s2 + $0xd4] sm:$0xf]
  %v825 = vld [vmem:[%s2 + $0xd8] sm:$0xf]
  %v826 = vld [vmem:[%s2 + $0xdc] sm:$0xf]
  %v827 = vld [vmem:[%s2 + $0xe0] sm:$0xf]
  %v828 = vld [vmem:[%s2 + $0xe4] sm:$0xf]
  %v829 = vld [vmem:[%s2 + $0xe8] sm:$0xf]
  %v830 = vld [vmem:[%s2 + $0xec] sm:$0xf]
  %v831 = vld [vmem:[%s2 + $0xf0] sm:$0xf]
  %v832 = vld [vmem:[%s2 + $0xf4] sm:$0xf]
  %v833 = vld [vmem:[%s2 + $0xf8] sm:$0xf]
  %v834 = vld [vmem:[%s2 + $0xfc] sm:$0xf]
  %v835 = vld [vmem:[%s2 + $0x100] sm:$0xf]
  %v836 = vld [vmem:[%s2 + $0x104] sm:$0xf]
  %v837 = vld [vmem:[%s2 + $0x108] sm:$0xf]
  %v838 = vld [vmem:[%s2 + $0x10c] sm:$0xf]
  %v839 = vld [vmem:[%s2 + $0x110] sm:$0xf]
  %v840 = vld [vmem:[%s2 + $0x114] sm:$0xf]
  %v841 = vld [vmem:[%s2 + $0x118] sm:$0xf]
  %v842 = vld [vmem:[%s2 + $0x11c] sm:$0xf]
  %v843 = vld [vmem:[%s2 + $0x120] sm:$0xf]
  %v844 = vld [vmem:[%s2 + $0x124] sm:$0xf]
  %v845 = vld [vmem:[%s2 + $0x128] sm:$0xf]
  %v846 = vld [vmem:[%s2 + $0x12c] sm:$0xf]
  %v847 = vld [vmem:[%s2 + $0x130] sm:$0xf]
  %v848 = vld [vmem:[%s2 + $0x134] sm:$0xf]
  %v849 = vld [vmem:[%s2 + $0x138] sm:$0xf]
  %v850 = vld [vmem:[%s2 + $0x13c] sm:$0xf]
  %v851 = vld [vmem:[%s2 + $0x140] sm:$0xf]
  %v852 = vld [vmem:[%s2 + $0x144] sm:$0xf]
  %v853 = vld [vmem:[%s2 + $0x148] sm:$0xf]
  %v854 = vld [vmem:[%s2 + $0x14c] sm:$0xf]
  %v855 = vld [vmem:[%s2 + $0x150] sm:$0xf]
  %v856 = vld [vmem:[%s2 + $0x154] sm:$0xf]
  %v857 = vld [vmem:[%s2 + $0x158] sm:$0xf]
  %v858 = vld [vmem:[%s2 + $0x15c] sm:$0xf]
  %v859 = vld [vmem:[%s2 + $0x160] sm:$0xf]
  %v860 = vld [vmem:[%s2 + $0x164] sm:$0xf]
  %v861 = vld [vmem:[%s2 + $0x168] sm:$0xf]
  %v862 = vld [vmem:[%s2 + $0x16c] sm:$0xf]
  %v863 = vld [vmem:[%s2 + $0x170] sm:$0xf]
  %v864 = vld [vmem:[%s2 + $0x174] sm:$0xf]
  %v865 = vld [vmem:[%s2 + $0x178] sm:$0xf]
  %v866 = vld [vmem:[%s2 + $0x17c] sm:$0xf]
  %v867 = vld [vmem:[%s2 + $0x180] sm:$0xf]
  %v868 = vld [vmem:[%s2 + $0x184] sm:$0xf]
  %v869 = vld [vmem:[%s2 + $0x188] sm:$0xf]
  %v870 = vld [vmem:[%s2 + $0x18c] sm:$0xf]
  %v871 = vld [vmem:[%s2 + $0x190] sm:$0xf]
  %v872 = vld [vmem:[%s2 + $0x194] sm:$0xf]
  %v873 = vld [vmem:[%s2 + $0x198] sm:$0xf]
  %v874 = vld [vmem:[%s2 + $0x19c] sm:$0xf]
  %v875 = vld [vmem:[%s2 + $0x1a0] sm:$0xf]
  %v876 = vld [vmem:[%s2 + $0x1a4] sm:$0xf]
  %v877 = vld [vmem:[%s2 + $0x1a8] sm:$0xf]
  %v878 = vld [vmem:[%s2 + $0x1ac] sm:$0xf]
  %v879 = vld [vmem:[%s2 + $0x1b0] sm:$0xf]
  %v880 = vld [vmem:[%s2 + $0x1b4] sm:$0xf]
  %v881 = vld [vmem:[%s2 + $0x1b8] sm:$0xf]
  %v882 = vld [vmem:[%s2 + $0x1bc] sm:$0xf]
  %v883 = vld [vmem:[%s2 + $0x1c0] sm:$0xf]
  %v884 = vld [vmem:[%s2 + $0x1c4] sm:$0xf]
  %v885 = vld [vmem:[%s2 + $0x1c8] sm:$0xf]
  %v886 = vld [vmem:[%s2 + $0x1cc] sm:$0xf]
  %v887 = vld [vmem:[%s2 + $0x1d0] sm:$0xf]
  %v888 = vld [vmem:[%s2 + $0x1d4] sm:$0xf]
  %v889 = vld [vmem:[%s2 + $0x1d8] sm:$0xf]
  %v890 = vld [vmem:[%s2 + $0x1dc] sm:$0xf]
  %v891 = vld [vmem:[%s2 + $0x1e0] sm:$0xf]
  %v892 = vld [vmem:[%s2 + $0x1e4] sm:$0xf]
  %v893 = vld [vmem:[%s2 + $0x1e8] sm:$0xf]
  %v894 = vld [vmem:[%s2 + $0x1ec] sm:$0xf]
  %v895 = vld [vmem:[%s2 + $0x1f0] sm:$0xf]
  %v896 = vld [vmem:[%s2 + $0x1f4] sm:$0xf]
  %v897 = vld [vmem:[%s2 + $0x1f8] sm:$0xf]
  %v898 = vld [vmem:[%s2 + $0x1fc] sm:$0xf]
  %v907 = vunpack.c.l.b16 %v763
  %v908 = vunpack.c.h.b16 %v763
  %v909 = vunpack.c.l.b16 %v764
  %v910 = vunpack.c.h.b16 %v764
  %v911 = vunpack.c.l.b16 %v765
  %v912 = vunpack.c.h.b16 %v765
  %v913 = vunpack.c.l.b16 %v766
  %v914 = vunpack.c.h.b16 %v766
  %v915 = vunpack.c.l.b16 %v767
  %v916 = vunpack.c.h.b16 %v767
  %v917 = vunpack.c.l.b16 %v768
  %v918 = vunpack.c.h.b16 %v768
  %v919 = vunpack.c.l.b16 %v769
  %v920 = vunpack.c.h.b16 %v769
  %v921 = vunpack.c.l.b16 %v770
  %v922 = vunpack.c.h.b16 %v770
  %v923 = vpack.c.b16 %v915, %v907
  %v924 = vpack.c.b16 %v916, %v908
  %v925 = vpack.c.b16 %v917, %v909
  %v926 = vpack.c.b16 %v918, %v910
  %v927 = vpack.c.b16 %v919, %v911
  %v928 = vpack.c.b16 %v920, %v912
  %v929 = vpack.c.b16 %v921, %v913
  %v930 = vpack.c.b16 %v922, %v914
  %v1067 = vunpack.c.l.b16 %v771
  %v1068 = vunpack.c.l.b16 %v772
  %v1069 = vunpack.c.l.b16 %v773
  %v1070 = vunpack.c.l.b16 %v774
  %v1071 = vunpack.c.l.b16 %v775
  %v1072 = vunpack.c.l.b16 %v776
  %v1073 = vunpack.c.l.b16 %v777
  %v1074 = vunpack.c.l.b16 %v778
  %v1075 = vunpack.c.l.b16 %v779
  %v1076 = vunpack.c.l.b16 %v780
  %v1077 = vunpack.c.l.b16 %v781
  %v1078 = vunpack.c.l.b16 %v782
  %v1079 = vunpack.c.l.b16 %v783
  %v1080 = vunpack.c.l.b16 %v784
  %v1081 = vunpack.c.l.b16 %v785
  %v1082 = vunpack.c.l.b16 %v786
  %v1083 = vunpack.c.l.b16 %v787
  %v1084 = vunpack.c.l.b16 %v788
  %v1085 = vunpack.c.l.b16 %v789
  %v1086 = vunpack.c.l.b16 %v790
  %v1087 = vunpack.c.l.b16 %v791
  %v1088 = vunpack.c.l.b16 %v792
  %v1089 = vunpack.c.l.b16 %v793
  %v1090 = vunpack.c.l.b16 %v794
  %v1091 = vunpack.c.l.b16 %v795
  %v1092 = vunpack.c.l.b16 %v796
  %v1093 = vunpack.c.l.b16 %v797
  %v1094 = vunpack.c.l.b16 %v798
  %v1095 = vunpack.c.l.b16 %v799
  %v1096 = vunpack.c.l.b16 %v800
  %v1097 = vunpack.c.l.b16 %v801
  %v1098 = vunpack.c.l.b16 %v802
  %v1099 = vunpack.c.l.b16 %v803
  %v1100 = vunpack.c.l.b16 %v804
  %v1101 = vunpack.c.l.b16 %v805
  %v1102 = vunpack.c.l.b16 %v806
  %v1103 = vunpack.c.l.b16 %v807
  %v1104 = vunpack.c.l.b16 %v808
  %v1105 = vunpack.c.l.b16 %v809
  %v1106 = vunpack.c.l.b16 %v810
  %v1107 = vunpack.c.l.b16 %v811
  %v1108 = vunpack.c.l.b16 %v812
  %v1109 = vunpack.c.l.b16 %v813
  %v1110 = vunpack.c.l.b16 %v814
  %v1111 = vunpack.c.l.b16 %v815
  %v1112 = vunpack.c.l.b16 %v816
  %v1113 = vunpack.c.l.b16 %v817
  %v1114 = vunpack.c.l.b16 %v818
  %v1115 = vunpack.c.l.b16 %v819
  %v1116 = vunpack.c.l.b16 %v820
  %v1117 = vunpack.c.l.b16 %v821
  %v1118 = vunpack.c.l.b16 %v822
  %v1119 = vunpack.c.l.b16 %v823
  %v1120 = vunpack.c.l.b16 %v824
  %v1121 = vunpack.c.l.b16 %v825
  %v1122 = vunpack.c.l.b16 %v826
  %v1123 = vunpack.c.l.b16 %v827
  %v1124 = vunpack.c.l.b16 %v828
  %v1125 = vunpack.c.l.b16 %v829
  %v1126 = vunpack.c.l.b16 %v830
  %v1127 = vunpack.c.l.b16 %v831
  %v1128 = vunpack.c.l.b16 %v832
  %v1129 = vunpack.c.l.b16 %v833
  %v1130 = vunpack.c.l.b16 %v834
  %v1131 = vunpack.c.l.b16 %v835
  %v1132 = vunpack.c.l.b16 %v836
  %v1133 = vunpack.c.l.b16 %v837
  %v1134 = vunpack.c.l.b16 %v838
  %v1135 = vunpack.c.l.b16 %v839
  %v1136 = vunpack.c.l.b16 %v840
  %v1137 = vunpack.c.l.b16 %v841
  %v1138 = vunpack.c.l.b16 %v842
  %v1139 = vunpack.c.l.b16 %v843
  %v1140 = vunpack.c.l.b16 %v844
  %v1141 = vunpack.c.l.b16 %v845
  %v1142 = vunpack.c.l.b16 %v846
  %v1143 = vunpack.c.l.b16 %v847
  %v1144 = vunpack.c.l.b16 %v848
  %v1145 = vunpack.c.l.b16 %v849
  %v1146 = vunpack.c.l.b16 %v850
  %v1147 = vunpack.c.l.b16 %v851
  %v1148 = vunpack.c.l.b16 %v852
  %v1149 = vunpack.c.l.b16 %v853
  %v1150 = vunpack.c.l.b16 %v854
  %v1151 = vunpack.c.l.b16 %v855
  %v1152 = vunpack.c.l.b16 %v856
  %v1153 = vunpack.c.l.b16 %v857
  %v1154 = vunpack.c.l.b16 %v858
  %v1155 = vunpack.c.l.b16 %v859
  %v1156 = vunpack.c.l.b16 %v860
  %v1157 = vunpack.c.l.b16 %v861
  %v1158 = vunpack.c.l.b16 %v862
  %v1159 = vunpack.c.l.b16 %v863
  %v1160 = vunpack.c.l.b16 %v864
  %v1161 = vunpack.c.l.b16 %v865
  %v1162 = vunpack.c.l.b16 %v866
  %v1163 = vunpack.c.l.b16 %v867
  %v1164 = vunpack.c.l.b16 %v868
  %v1165 = vunpack.c.l.b16 %v869
  %v1166 = vunpack.c.l.b16 %v870
  %v1167 = vunpack.c.l.b16 %v871
  %v1168 = vunpack.c.l.b16 %v872
  %v1169 = vunpack.c.l.b16 %v873
  %v1170 = vunpack.c.l.b16 %v874
  %v1171 = vunpack.c.l.b16 %v875
  %v1172 = vunpack.c.l.b16 %v876
  %v1173 = vunpack.c.l.b16 %v877
  %v1174 = vunpack.c.l.b16 %v878
  %v1175 = vunpack.c.l.b16 %v879
  %v1176 = vunpack.c.l.b16 %v880
  %v1177 = vunpack.c.l.b16 %v881
  %v1178 = vunpack.c.l.b16 %v882
  %v1179 = vunpack.c.l.b16 %v883
  %v1180 = vunpack.c.l.b16 %v884
  %v1181 = vunpack.c.l.b16 %v885
  %v1182 = vunpack.c.l.b16 %v886
  %v1183 = vunpack.c.l.b16 %v887
  %v1184 = vunpack.c.l.b16 %v888
  %v1185 = vunpack.c.l.b16 %v889
  %v1186 = vunpack.c.l.b16 %v890
  %v1187 = vunpack.c.l.b16 %v891
  %v1188 = vunpack.c.l.b16 %v892
  %v1189 = vunpack.c.l.b16 %v893
  %v1190 = vunpack.c.l.b16 %v894
  %v1191 = vunpack.c.l.b16 %v895
  %v1192 = vunpack.c.l.b16 %v896
  %v1193 = vunpack.c.l.b16 %v897
  %v1194 = vunpack.c.l.b16 %v898
  %v1195 = vpack.c.b16 %v1068, %v1067
  %v1196 = vpack.c.b16 %v1070, %v1069
  %v1197 = vpack.c.b16 %v1072, %v1071
  %v1198 = vpack.c.b16 %v1074, %v1073
  %v1199 = vpack.c.b16 %v1076, %v1075
  %v1200 = vpack.c.b16 %v1078, %v1077
  %v1201 = vpack.c.b16 %v1080, %v1079
  %v1202 = vpack.c.b16 %v1082, %v1081
  %v1203 = vpack.c.b16 %v1084, %v1083
  %v1204 = vpack.c.b16 %v1086, %v1085
  %v1205 = vpack.c.b16 %v1088, %v1087
  %v1206 = vpack.c.b16 %v1090, %v1089
  %v1207 = vpack.c.b16 %v1092, %v1091
  %v1208 = vpack.c.b16 %v1094, %v1093
  %v1209 = vpack.c.b16 %v1096, %v1095
  %v1210 = vpack.c.b16 %v1098, %v1097
  %v1211 = vpack.c.b16 %v1100, %v1099
  %v1212 = vpack.c.b16 %v1102, %v1101
  %v1213 = vpack.c.b16 %v1104, %v1103
  %v1214 = vpack.c.b16 %v1106, %v1105
  %v1215 = vpack.c.b16 %v1108, %v1107
  %v1216 = vpack.c.b16 %v1110, %v1109
  %v1217 = vpack.c.b16 %v1112, %v1111
  %v1218 = vpack.c.b16 %v1114, %v1113
  %v1219 = vpack.c.b16 %v1116, %v1115
  %v1220 = vpack.c.b16 %v1118, %v1117
  %v1221 = vpack.c.b16 %v1120, %v1119
  %v1222 = vpack.c.b16 %v1122, %v1121
  %v1223 = vpack.c.b16 %v1124, %v1123
  %v1224 = vpack.c.b16 %v1126, %v1125
  %v1225 = vpack.c.b16 %v1128, %v1127
  %v1226 = vpack.c.b16 %v1130, %v1129
  %v1227 = vpack.c.b16 %v1132, %v1131
  %v1228 = vpack.c.b16 %v1134, %v1133
  %v1229 = vpack.c.b16 %v1136, %v1135
  %v1230 = vpack.c.b16 %v1138, %v1137
  %v1231 = vpack.c.b16 %v1140, %v1139
  %v1232 = vpack.c.b16 %v1142, %v1141
  %v1233 = vpack.c.b16 %v1144, %v1143
  %v1234 = vpack.c.b16 %v1146, %v1145
  %v1235 = vpack.c.b16 %v1148, %v1147
  %v1236 = vpack.c.b16 %v1150, %v1149
  %v1237 = vpack.c.b16 %v1152, %v1151
  %v1238 = vpack.c.b16 %v1154, %v1153
  %v1239 = vpack.c.b16 %v1156, %v1155
  %v1240 = vpack.c.b16 %v1158, %v1157
  %v1241 = vpack.c.b16 %v1160, %v1159
  %v1242 = vpack.c.b16 %v1162, %v1161
  %v1243 = vpack.c.b16 %v1164, %v1163
  %v1244 = vpack.c.b16 %v1166, %v1165
  %v1245 = vpack.c.b16 %v1168, %v1167
  %v1246 = vpack.c.b16 %v1170, %v1169
  %v1247 = vpack.c.b16 %v1172, %v1171
  %v1248 = vpack.c.b16 %v1174, %v1173
  %v1249 = vpack.c.b16 %v1176, %v1175
  %v1250 = vpack.c.b16 %v1178, %v1177
  %v1251 = vpack.c.b16 %v1180, %v1179
  %v1252 = vpack.c.b16 %v1182, %v1181
  %v1253 = vpack.c.b16 %v1184, %v1183
  %v1254 = vpack.c.b16 %v1186, %v1185
  %v1255 = vpack.c.b16 %v1188, %v1187
  %v1256 = vpack.c.b16 %v1190, %v1189
  %v1257 = vpack.c.b16 %v1192, %v1191
  %v1258 = vpack.c.b16 %v1194, %v1193
  %1323 = vmatprep.subr.bf16.mxu0 0
  %1324 = vmatpush1.bf16.msra.mxu0 %v1202
  %1325 = vmatprep.subr.bf16.mxu0 0
  %1326 = vmatpush1.bf16.msra.mxu0 %v1201
  %1327 = vmatprep.subr.bf16.mxu0 0
  %1328 = vmatpush1.bf16.msra.mxu0 %v1200
  %1329 = vmatprep.subr.bf16.mxu0 0
  %1330 = vmatpush1.bf16.msra.mxu0 %v1199
  %1331 = vmatprep.subr.bf16.mxu0 0
  %1332 = vmatpush1.bf16.msra.mxu0 %v1198
  %1333 = vmatprep.subr.bf16.mxu0 0
  %1334 = vmatpush1.bf16.msra.mxu0 %v1197
  %1335 = vmatprep.subr.bf16.mxu0 0
  %1336 = vmatpush1.bf16.msra.mxu0 %v1196
  %1337 = vmatprep.subr.bf16.mxu0 0
  %1338 = vmatpush1.bf16.msra.mxu0 %v1195
  %1339 = vmatprep.subr.bf16.mxu0 0
  %1340 = vmatpush2.bf16.msra.mxu0 %v1210
  %1341 = vmatprep.subr.bf16.mxu0 0
  %1342 = vmatpush2.bf16.msra.mxu0 %v1209
  %1343 = vmatprep.subr.bf16.mxu0 0
  %1344 = vmatpush2.bf16.msra.mxu0 %v1208
  %1345 = vmatprep.subr.bf16.mxu0 0
  %1346 = vmatpush2.bf16.msra.mxu0 %v1207
  %1347 = vmatprep.subr.bf16.mxu0 0
  %1348 = vmatpush2.bf16.msra.mxu0 %v1206
  %1349 = vmatprep.subr.bf16.mxu0 0
  %1350 = vmatpush2.bf16.msra.mxu0 %v1205
  %1351 = vmatprep.subr.bf16.mxu0 0
  %1352 = vmatpush2.bf16.msra.mxu0 %v1204
  %1353 = vmatprep.subr.bf16.mxu0 0
  %1354 = vmatpush2.bf16.msra.mxu0 %v1203
  %1355 = vmatprep.mubr.bf16.mxu0 %v924
  %1356 = vmatmul.mubr.bf16.gmra.mxu0 %v923
  %v1357 = vpop.f32.mrf.mxu0
  %v1358 = vadd.f32 0.0, %v1357
  %v1359 = vpop.f32.mrf.mxu0
  %v1360 = vpop.f32.mrf.mxu0
  %v1361 = vadd.f32 0.0, %v1360
  %v1362 = vpop.f32.mrf.mxu0
  %1363 = vdwg.mxu0
  %1364 = vmatprep.subr.bf16.mxu0 0
  %1365 = vmatpush1.bf16.msra.mxu0 %v1218
  %1366 = vmatprep.subr.bf16.mxu0 0
  %1367 = vmatpush1.bf16.msra.mxu0 %v1217
  %1368 = vmatprep.subr.bf16.mxu0 0
  %1369 = vmatpush1.bf16.msra.mxu0 %v1216
  %1370 = vmatprep.subr.bf16.mxu0 0
  %1371 = vmatpush1.bf16.msra.mxu0 %v1215
  %1372 = vmatprep.subr.bf16.mxu0 0
  %1373 = vmatpush1.bf16.msra.mxu0 %v1214
  %1374 = vmatprep.subr.bf16.mxu0 0
  %1375 = vmatpush1.bf16.msra.mxu0 %v1213
  %1376 = vmatprep.subr.bf16.mxu0 0
  %1377 = vmatpush1.bf16.msra.mxu0 %v1212
  %1378 = vmatprep.subr.bf16.mxu0 0
  %1379 = vmatpush1.bf16.msra.mxu0 %v1211
  %1380 = vmatprep.subr.bf16.mxu0 0
  %1381 = vmatpush2.bf16.msra.mxu0 %v1226
  %1382 = vmatprep.subr.bf16.mxu0 0
  %1383 = vmatpush2.bf16.msra.mxu0 %v1225
  %1384 = vmatprep.subr.bf16.mxu0 0
  %1385 = vmatpush2.bf16.msra.mxu0 %v1224
  %1386 = vmatprep.subr.bf16.mxu0 0
  %1387 = vmatpush2.bf16.msra.mxu0 %v1223
  %1388 = vmatprep.subr.bf16.mxu0 0
  %1389 = vmatpush2.bf16.msra.mxu0 %v1222
  %1390 = vmatprep.subr.bf16.mxu0 0
  %1391 = vmatpush2.bf16.msra.mxu0 %v1221
  %1392 = vmatprep.subr.bf16.mxu0 0
  %1393 = vmatpush2.bf16.msra.mxu0 %v1220
  %1394 = vmatprep.subr.bf16.mxu0 0
  %1395 = vmatpush2.bf16.msra.mxu0 %v1219
  %1396 = vmatprep.mubr.bf16.mxu0 %v926
  %1397 = vmatmul.mubr.bf16.gmra.mxu0 %v925
  %v1398 = vpop.f32.mrf.mxu0
  %v1399 = vadd.f32 %v1358, %v1398
  %v1400 = vpop.f32.mrf.mxu0
  %v1401 = vpop.f32.mrf.mxu0
  %v1402 = vadd.f32 %v1361, %v1401
  %v1403 = vpop.f32.mrf.mxu0
  %1404 = vdwg.mxu0
  %1405 = vmatprep.subr.bf16.mxu0 0
  %1406 = vmatpush1.bf16.msra.mxu0 %v1234
  %1407 = vmatprep.subr.bf16.mxu0 0
  %1408 = vmatpush1.bf16.msra.mxu0 %v1233
  %1409 = vmatprep.subr.bf16.mxu0 0
  %1410 = vmatpush1.bf16.msra.mxu0 %v1232
  %1411 = vmatprep.subr.bf16.mxu0 0
  %1412 = vmatpush1.bf16.msra.mxu0 %v1231
  %1413 = vmatprep.subr.bf16.mxu0 0
  %1414 = vmatpush1.bf16.msra.mxu0 %v1230
  %1415 = vmatprep.subr.bf16.mxu0 0
  %1416 = vmatpush1.bf16.msra.mxu0 %v1229
  %1417 = vmatprep.subr.bf16.mxu0 0
  %1418 = vmatpush1.bf16.msra.mxu0 %v1228
  %1419 = vmatprep.subr.bf16.mxu0 0
  %1420 = vmatpush1.bf16.msra.mxu0 %v1227
  %1421 = vmatprep.subr.bf16.mxu0 0
  %1422 = vmatpush2.bf16.msra.mxu0 %v1242
  %1423 = vmatprep.subr.bf16.mxu0 0
  %1424 = vmatpush2.bf16.msra.mxu0 %v1241
  %1425 = vmatprep.subr.bf16.mxu0 0
  %1426 = vmatpush2.bf16.msra.mxu0 %v1240
  %1427 = vmatprep.subr.bf16.mxu0 0
  %1428 = vmatpush2.bf16.msra.mxu0 %v1239
  %1429 = vmatprep.subr.bf16.mxu0 0
  %1430 = vmatpush2.bf16.msra.mxu0 %v1238
  %1431 = vmatprep.subr.bf16.mxu0 0
  %1432 = vmatpush2.bf16.msra.mxu0 %v1237
  %1433 = vmatprep.subr.bf16.mxu0 0
  %1434 = vmatpush2.bf16.msra.mxu0 %v1236
  %1435 = vmatprep.subr.bf16.mxu0 0
  %1436 = vmatpush2.bf16.msra.mxu0 %v1235
  %1437 = vmatprep.mubr.bf16.mxu0 %v928
  %1438 = vmatmul.mubr.bf16.gmra.mxu0 %v927
  %v1439 = vpop.f32.mrf.mxu0
  %v1440 = vadd.f32 %v1399, %v1439
  %v1441 = vpop.f32.mrf.mxu0
  %v1442 = vpop.f32.mrf.mxu0
  %v1443 = vadd.f32 %v1402, %v1442
  %v1444 = vpop.f32.mrf.mxu0
  %1445 = vdwg.mxu0
  %1446 = vmatprep.subr.bf16.mxu0 0
  %1447 = vmatpush1.bf16.msra.mxu0 %v1250
  %1448 = vmatprep.subr.bf16.mxu0 0
  %1449 = vmatpush1.bf16.msra.mxu0 %v1249
  %1450 = vmatprep.subr.bf16.mxu0 0
  %1451 = vmatpush1.bf16.msra.mxu0 %v1248
  %1452 = vmatprep.subr.bf16.mxu0 0
  %1453 = vmatpush1.bf16.msra.mxu0 %v1247
  %1454 = vmatprep.subr.bf16.mxu0 0
  %1455 = vmatpush1.bf16.msra.mxu0 %v1246
  %1456 = vmatprep.subr.bf16.mxu0 0
  %1457 = vmatpush1.bf16.msra.mxu0 %v1245
  %1458 = vmatprep.subr.bf16.mxu0 0
  %1459 = vmatpush1.bf16.msra.mxu0 %v1244
  %1460 = vmatprep.subr.bf16.mxu0 0
  %1461 = vmatpush1.bf16.msra.mxu0 %v1243
  %1462 = vmatprep.subr.bf16.mxu0 0
  %1463 = vmatpush2.bf16.msra.mxu0 %v1258
  %1464 = vmatprep.subr.bf16.mxu0 0
  %1465 = vmatpush2.bf16.msra.mxu0 %v1257
  %1466 = vmatprep.subr.bf16.mxu0 0
  %1467 = vmatpush2.bf16.msra.mxu0 %v1256
  %1468 = vmatprep.subr.bf16.mxu0 0
  %1469 = vmatpush2.bf16.msra.mxu0 %v1255
  %1470 = vmatprep.subr.bf16.mxu0 0
  %1471 = vmatpush2.bf16.msra.mxu0 %v1254
  %1472 = vmatprep.subr.bf16.mxu0 0
  %1473 = vmatpush2.bf16.msra.mxu0 %v1253
  %1474 = vmatprep.subr.bf16.mxu0 0
  %1475 = vmatpush2.bf16.msra.mxu0 %v1252
  %1476 = vmatprep.subr.bf16.mxu0 0
  %1477 = vmatpush2.bf16.msra.mxu0 %v1251
  %1478 = vmatprep.mubr.bf16.mxu0 %v930
  %1479 = vmatmul.mubr.bf16.gmra.mxu0 %v929
  %v1480 = vpop.f32.mrf.mxu0
  %v1481 = vadd.f32 %v1440, %v1480
  %v1482 = vpop.f32.mrf.mxu0
  %v1483 = vpop.f32.mrf.mxu0
  %v1484 = vadd.f32 %v1443, %v1483
  %v1485 = vpop.f32.mrf.mxu0
  %1486 = vdwg.mxu0
  %v1487 = vadd.f32 %v761, %v1481
  %v1488 = vadd.f32 %v762, %v1484
  %1489 = vst.msk [vmem:[#allocation3] sm:$0xff] %vm758, %v1487
  %1490 = vst.msk [vmem:[#allocation3 + $0x8] sm:$0xff] %vm758, %v1488
  // Predicated region
  $region26: #{prototypical_forward.1} parent=0 // pred_check
    %p1491 = pneg %p21
  $region27: #{prototypical_forward.1} parent=0 // pred_check_branch
    %1493 = sbr.rel (%p1491) target = $region29
  $region28: #{prototypical_forward.1} parent=0 // pred_region
    %v1494 = vld [vmem:[%s3] sm:$0x1]
    %v1495 = vld [vmem:[#allocation2] sm:$0xff]
    %v1496 = vld [vmem:[#allocation2 + $0x8] sm:$0xff]
    %v1498 = vlaneseq
    %v1499 = vshrl.u32 %v1498, 7
    %v1500 = vsub.s32 0, %v1499
    %v1501 = vrot.slane %v1494, %v1500
    %v1503 = vadd.f32 %v1495, %v1501
    %v1504 = vadd.f32 %v1496, %v1501
    %v1505 = vmax.f32 %v1503, 0.0
    %v1506 = vmax.f32 %v1504, 0.0
    %v1507 = vld [vmem:[#allocation3] sm:$0xff]
    %v1508 = vld [vmem:[#allocation3 + $0x8] sm:$0xff]
    %v1509 = vadd.f32 %v1507, %v1501
    %v1510 = vadd.f32 %v1508, %v1501
    %v1511 = vmax.f32 %v1509, 0.0
    %v1512 = vmax.f32 %v1510, 0.0
    %v1513 = vld [vmem:[%s4] sm:$0xff]
    %v1514 = vld [vmem:[%s4 + $0x8] sm:$0xff]
    %v1515 = vld [vmem:[%s4 + $0x10] sm:$0xff]
    %v1516 = vld [vmem:[%s4 + $0x18] sm:$0xff]
    %v1517 = vld [vmem:[%s4 + $0x20] sm:$0xff]
    %v1518 = vld [vmem:[%s4 + $0x28] sm:$0xff]
    %v1519 = vld [vmem:[%s4 + $0x30] sm:$0xff]
    %v1520 = vld [vmem:[%s4 + $0x38] sm:$0xff]
    %v1521 = vld [vmem:[%s4 + $0x40] sm:$0xff]
    %v1522 = vld [vmem:[%s4 + $0x48] sm:$0xff]
    %v1523 = vld [vmem:[%s4 + $0x50] sm:$0xff]
    %v1524 = vld [vmem:[%s4 + $0x58] sm:$0xff]
    %v1525 = vld [vmem:[%s4 + $0x60] sm:$0xff]
    %v1526 = vld [vmem:[%s4 + $0x68] sm:$0xff]
    %v1527 = vld [vmem:[%s4 + $0x70] sm:$0xff]
    %v1528 = vld [vmem:[%s4 + $0x78] sm:$0xff]
    %vm1529 = vcmask 130048
    %v1531 = vsel %vm1529, %v1513, 0
    %v1534 = vsel %vm1529, %v1514, 0
    %v1537 = vsel %vm1529, %v1515, 0
    %v1540 = vsel %vm1529, %v1516, 0
    %v1543 = vsel %vm1529, %v1517, 0
    %v1546 = vsel %vm1529, %v1518, 0
    %v1549 = vsel %vm1529, %v1519, 0
    %v1552 = vsel %vm1529, %v1520, 0
    %v1555 = vsel %vm1529, %v1521, 0
    %v1558 = vsel %vm1529, %v1522, 0
    %v1561 = vsel %vm1529, %v1523, 0
    %v1564 = vsel %vm1529, %v1524, 0
    %v1567 = vsel %vm1529, %v1525, 0
    %v1570 = vsel %vm1529, %v1526, 0
    %v1573 = vsel %vm1529, %v1527, 0
    %v1576 = vsel %vm1529, %v1528, 0
    %1578 = vmatprep.subr.mxu0 0.0
    %1579 = vmatpush1.msra.mxu0 0.0
    %1580 = vmatprep.subr.mxu0 0.0
    %1581 = vmatpush1.msra.mxu0 0.0
    %1582 = vmatprep.subr.mxu0 0.0
    %1583 = vmatpush1.msra.mxu0 0.0
    %1584 = vmatprep.subr.mxu0 0.0
    %1585 = vmatpush1.msra.mxu0 0.0
    %1586 = vmatprep.subr.mxu0 0.0
    %1587 = vmatpush1.msra.mxu0 0.0
    %1588 = vmatprep.subr.mxu0 0.0
    %1589 = vmatpush1.msra.mxu0 0.0
    %1590 = vmatprep.subr.mxu0 0.0
    %1591 = vmatpush1.msra.mxu0 0.0
    %1592 = vmatprep.subr.mxu0 0.0
    %1593 = vmatpush1.msra.mxu0 0.0
    %1594 = vmatprep.subr.mxu0 0.0
    %1595 = vmatpush1.msra.mxu0 0.0
    %1596 = vmatprep.subr.mxu0 0.0
    %1597 = vmatpush1.msra.mxu0 0.0
    %1598 = vmatprep.subr.mxu0 0.0
    %1599 = vmatpush1.msra.mxu0 0.0
    %1600 = vmatprep.subr.mxu0 0.0
    %1601 = vmatpush1.msra.mxu0 0.0
    %1602 = vmatprep.subr.mxu0 0.0
    %1603 = vmatpush1.msra.mxu0 0.0
    %1604 = vmatprep.subr.mxu0 0.0
    %1605 = vmatpush1.msra.mxu0 0.0
    %1606 = vmatprep.subr.mxu0 0.0
    %1607 = vmatpush1.msra.mxu0 %v1506
    %1608 = vmatprep.subr.mxu0 0.0
    %1609 = vmatpush1.msra.mxu0 %v1505
    %1610 = vmatprep.subr.mxu0 0.0
    %1611 = vmatpush2.msra.mxu0 0.0
    %1612 = vmatprep.subr.mxu0 0.0
    %1613 = vmatpush2.msra.mxu0 0.0
    %1614 = vmatprep.subr.mxu0 0.0
    %1615 = vmatpush2.msra.mxu0 0.0
    %1616 = vmatprep.subr.mxu0 0.0
    %1617 = vmatpush2.msra.mxu0 0.0
    %1618 = vmatprep.subr.mxu0 0.0
    %1619 = vmatpush2.msra.mxu0 0.0
    %1620 = vmatprep.subr.mxu0 0.0
    %1621 = vmatpush2.msra.mxu0 0.0
    %1622 = vmatprep.subr.mxu0 0.0
    %1623 = vmatpush2.msra.mxu0 0.0
    %1624 = vmatprep.subr.mxu0 0.0
    %1625 = vmatpush2.msra.mxu0 0.0
    %1626 = vmatprep.subr.mxu0 0.0
    %1627 = vmatpush2.msra.mxu0 0.0
    %1628 = vmatprep.subr.mxu0 0.0
    %1629 = vmatpush2.msra.mxu0 0.0
    %1630 = vmatprep.subr.mxu0 0.0
    %1631 = vmatpush2.msra.mxu0 0.0
    %1632 = vmatprep.subr.mxu0 0.0
    %1633 = vmatpush2.msra.mxu0 0.0
    %1634 = vmatprep.subr.mxu0 0.0
    %1635 = vmatpush2.msra.mxu0 0.0
    %1636 = vmatprep.subr.mxu0 0.0
    %1637 = vmatpush2.msra.mxu0 0.0
    %1638 = vmatprep.subr.mxu0 0.0
    %1639 = vmatpush2.msra.mxu0 0.0
    %1640 = vmatprep.subr.mxu0 0.0
    %1641 = vmatpush2.msra.mxu0 0.0
    %1642 = vmatprep.mubr.f32.mxu0 0.0
    %1643 = vmatmul.mubr.f32.gmra.mxu0 %v1531
    %v1644 = vpop.f32.mrf.mxu0
    %v1645 = vadd.f32 0.0, %v1644
    %v1646 = vpop.f32.mrf.mxu0
    %1647 = vmatprep.mubr.f32.mxu0 0.0
    %1648 = vmatmul.mubr.f32.gmra.mxu0 %v1534
    %v1649 = vpop.f32.mrf.mxu0
    %v1650 = vadd.f32 0.0, %v1649
    %v1651 = vpop.f32.mrf.mxu0
    %1652 = vmatprep.mubr.f32.mxu0 0.0
    %1653 = vmatmul.mubr.f32.gmra.mxu0 %v1537
    %v1654 = vpop.f32.mrf.mxu0
    %v1655 = vadd.f32 0.0, %v1654
    %v1656 = vpop.f32.mrf.mxu0
    %1657 = vmatprep.mubr.f32.mxu0 0.0
    %1658 = vmatmul.mubr.f32.gmra.mxu0 %v1540
    %v1659 = vpop.f32.mrf.mxu0
    %v1660 = vadd.f32 0.0, %v1659
    %v1661 = vpop.f32.mrf.mxu0
    %1662 = vmatprep.mubr.f32.mxu0 0.0
    %1663 = vmatmul.mubr.f32.gmra.mxu0 %v1543
    %v1664 = vpop.f32.mrf.mxu0
    %v1665 = vadd.f32 0.0, %v1664
    %v1666 = vpop.f32.mrf.mxu0
    %1667 = vmatprep.mubr.f32.mxu0 0.0
    %1668 = vmatmul.mubr.f32.gmra.mxu0 %v1546
    %v1669 = vpop.f32.mrf.mxu0
    %v1670 = vadd.f32 0.0, %v1669
    %v1671 = vpop.f32.mrf.mxu0
    %1672 = vmatprep.mubr.f32.mxu0 0.0
    %1673 = vmatmul.mubr.f32.gmra.mxu0 %v1549
    %v1674 = vpop.f32.mrf.mxu0
    %v1675 = vadd.f32 0.0, %v1674
    %v1676 = vpop.f32.mrf.mxu0
    %1677 = vmatprep.mubr.f32.mxu0 0.0
    %1678 = vmatmul.mubr.f32.gmra.mxu0 %v1552
    %v1679 = vpop.f32.mrf.mxu0
    %v1680 = vadd.f32 0.0, %v1679
    %v1681 = vpop.f32.mrf.mxu0
    %1682 = vmatprep.mubr.f32.mxu0 0.0
    %1683 = vmatmul.mubr.f32.gmra.mxu0 %v1555
    %v1684 = vpop.f32.mrf.mxu0
    %v1685 = vadd.f32 0.0, %v1684
    %v1686 = vpop.f32.mrf.mxu0
    %1687 = vmatprep.mubr.f32.mxu0 0.0
    %1688 = vmatmul.mubr.f32.gmra.mxu0 %v1558
    %v1689 = vpop.f32.mrf.mxu0
    %v1690 = vadd.f32 0.0, %v1689
    %v1691 = vpop.f32.mrf.mxu0
    %1692 = vmatprep.mubr.f32.mxu0 0.0
    %1693 = vmatmul.mubr.f32.gmra.mxu0 %v1561
    %v1694 = vpop.f32.mrf.mxu0
    %v1695 = vadd.f32 0.0, %v1694
    %v1696 = vpop.f32.mrf.mxu0
    %1697 = vmatprep.mubr.f32.mxu0 0.0
    %1698 = vmatmul.mubr.f32.gmra.mxu0 %v1564
    %v1699 = vpop.f32.mrf.mxu0
    %v1700 = vadd.f32 0.0, %v1699
    %v1701 = vpop.f32.mrf.mxu0
    %1702 = vmatprep.mubr.f32.mxu0 0.0
    %1703 = vmatmul.mubr.f32.gmra.mxu0 %v1567
    %v1704 = vpop.f32.mrf.mxu0
    %v1705 = vadd.f32 0.0, %v1704
    %v1706 = vpop.f32.mrf.mxu0
    %1707 = vmatprep.mubr.f32.mxu0 0.0
    %1708 = vmatmul.mubr.f32.gmra.mxu0 %v1570
    %v1709 = vpop.f32.mrf.mxu0
    %v1710 = vadd.f32 0.0, %v1709
    %v1711 = vpop.f32.mrf.mxu0
    %1712 = vmatprep.mubr.f32.mxu0 0.0
    %1713 = vmatmul.mubr.f32.gmra.mxu0 %v1573
    %v1714 = vpop.f32.mrf.mxu0
    %v1715 = vadd.f32 0.0, %v1714
    %v1716 = vpop.f32.mrf.mxu0
    %1717 = vmatprep.mubr.f32.mxu0 0.0
    %1718 = vmatmul.mubr.f32.gmra.mxu0 %v1576
    %v1719 = vpop.f32.mrf.mxu0
    %v1720 = vadd.f32 0.0, %v1719
    %v1721 = vpop.f32.mrf.mxu0
    %1722 = vdwg.mxu0
    %v1724 = vsel %vm758, %v1511, 0
    %v1727 = vsel %vm758, %v1512, 0
    %v1730 = vsel %vm758, %v1645, 0
    %v1733 = vsel %vm758, %v1650, 0
    %v1736 = vsel %vm758, %v1655, 0
    %v1739 = vsel %vm758, %v1660, 0
    %v1742 = vsel %vm758, %v1665, 0
    %v1745 = vsel %vm758, %v1670, 0
    %v1748 = vsel %vm758, %v1675, 0
    %v1751 = vsel %vm758, %v1680, 0
    %v1754 = vsel %vm758, %v1685, 0
    %v1757 = vsel %vm758, %v1690, 0
    %v1760 = vsel %vm758, %v1695, 0
    %v1763 = vsel %vm758, %v1700, 0
    %v1766 = vsel %vm758, %v1705, 0
    %v1769 = vsel %vm758, %v1710, 0
    %v1772 = vsel %vm758, %v1715, 0
    %v1775 = vsel %vm758, %v1720, 0
    %1777 = vmatprep.subr.mxu0 0.0
    %1778 = vmatpush1.xpose.msra.mxu0 %v1775
    %1779 = vmatprep.subr.mxu0 0.0
    %1780 = vmatpush1.xpose.msra.mxu0 %v1772
    %1781 = vmatprep.subr.mxu0 0.0
    %1782 = vmatpush1.xpose.msra.mxu0 %v1769
    %1783 = vmatprep.subr.mxu0 0.0
    %1784 = vmatpush1.xpose.msra.mxu0 %v1766
    %1785 = vmatprep.subr.mxu0 0.0
    %1786 = vmatpush1.xpose.msra.mxu0 %v1763
    %1787 = vmatprep.subr.mxu0 0.0
    %1788 = vmatpush1.xpose.msra.mxu0 %v1760
    %1789 = vmatprep.subr.mxu0 0.0
    %1790 = vmatpush1.xpose.msra.mxu0 %v1757
    %1791 = vmatprep.subr.mxu0 0.0
    %1792 = vmatpush1.xpose.msra.mxu0 %v1754
    %1793 = vmatprep.subr.mxu0 0.0
    %1794 = vmatpush1.xpose.msra.mxu0 %v1751
    %1795 = vmatprep.subr.mxu0 0.0
    %1796 = vmatpush1.xpose.msra.mxu0 %v1748
    %1797 = vmatprep.subr.mxu0 0.0
    %1798 = vmatpush1.xpose.msra.mxu0 %v1745
    %1799 = vmatprep.subr.mxu0 0.0
    %1800 = vmatpush1.xpose.msra.mxu0 %v1742
    %1801 = vmatprep.subr.mxu0 0.0
    %1802 = vmatpush1.xpose.msra.mxu0 %v1739
    %1803 = vmatprep.subr.mxu0 0.0
    %1804 = vmatpush1.xpose.msra.mxu0 %v1736
    %1805 = vmatprep.subr.mxu0 0.0
    %1806 = vmatpush1.xpose.msra.mxu0 %v1733
    %1807 = vmatprep.subr.mxu0 0.0
    %1808 = vmatpush1.xpose.msra.mxu0 %v1730
    %1809 = vmatprep.subr.mxu0 0.0
    %1810 = vmatpush2.xpose.msra.mxu0 0.0
    %1811 = vmatprep.subr.mxu0 0.0
    %1812 = vmatpush2.xpose.msra.mxu0 0.0
    %1813 = vmatprep.subr.mxu0 0.0
    %1814 = vmatpush2.xpose.msra.mxu0 0.0
    %1815 = vmatprep.subr.mxu0 0.0
    %1816 = vmatpush2.xpose.msra.mxu0 0.0
    %1817 = vmatprep.subr.mxu0 0.0
    %1818 = vmatpush2.xpose.msra.mxu0 0.0
    %1819 = vmatprep.subr.mxu0 0.0
    %1820 = vmatpush2.xpose.msra.mxu0 0.0
    %1821 = vmatprep.subr.mxu0 0.0
    %1822 = vmatpush2.xpose.msra.mxu0 0.0
    %1823 = vmatprep.subr.mxu0 0.0
    %1824 = vmatpush2.xpose.msra.mxu0 0.0
    %1825 = vmatprep.subr.mxu0 0.0
    %1826 = vmatpush2.xpose.msra.mxu0 0.0
    %1827 = vmatprep.subr.mxu0 0.0
    %1828 = vmatpush2.xpose.msra.mxu0 0.0
    %1829 = vmatprep.subr.mxu0 0.0
    %1830 = vmatpush2.xpose.msra.mxu0 0.0
    %1831 = vmatprep.subr.mxu0 0.0
    %1832 = vmatpush2.xpose.msra.mxu0 0.0
    %1833 = vmatprep.subr.mxu0 0.0
    %1834 = vmatpush2.xpose.msra.mxu0 0.0
    %1835 = vmatprep.subr.mxu0 0.0
    %1836 = vmatpush2.xpose.msra.mxu0 0.0
    %1837 = vmatprep.subr.mxu0 0.0
    %1838 = vmatpush2.xpose.msra.mxu0 0.0
    %1839 = vmatprep.subr.mxu0 0.0
    %1840 = vmatpush2.xpose.msra.mxu0 0.0
    %1841 = vmatprep.mubr.f32.mxu0 0.0
    %1842 = vmatmul.mubr.f32.gmra.mxu0 %v1724
    %v1843 = vpop.f32.mrf.mxu0
    %v1844 = vadd.f32 0.0, %v1843
    %v1845 = vpop.f32.mrf.mxu0
    %1846 = vmatprep.mubr.f32.mxu0 0.0
    %1847 = vmatmul.mubr.f32.gmra.mxu0 %v1727
    %v1848 = vpop.f32.mrf.mxu0
    %v1849 = vadd.f32 0.0, %v1848
    %v1850 = vpop.f32.mrf.mxu0
    %1851 = vdwg.mxu0
    %v1852 = vmul.f32 %v1511, %v1511
    %v1853 = vmul.f32 %v1512, %v1512
    %v1854 = vsel %vm758, %v1852, 0.0
    %1855 = vadd.xlane.f32.xlu0 %v1854
    %v1856 = vpop.xlane.xlu0 %1855
    %v1857 = vsel %vm758, %v1853, 0.0
    %1858 = vadd.xlane.f32.xlu0 %v1857
    %v1859 = vpop.xlane.xlu0 %1858
    %v1860 = vmul.f32 %v1645, %v1645
    %v1861 = vmul.f32 %v1650, %v1650
    %v1862 = vmul.f32 %v1655, %v1655
    %v1863 = vmul.f32 %v1660, %v1660
    %v1864 = vmul.f32 %v1665, %v1665
    %v1865 = vmul.f32 %v1670, %v1670
    %v1866 = vmul.f32 %v1675, %v1675
    %v1867 = vmul.f32 %v1680, %v1680
    %v1868 = vmul.f32 %v1685, %v1685
    %v1869 = vmul.f32 %v1690, %v1690
    %v1870 = vmul.f32 %v1695, %v1695
    %v1871 = vmul.f32 %v1700, %v1700
    %v1872 = vmul.f32 %v1705, %v1705
    %v1873 = vmul.f32 %v1710, %v1710
    %v1874 = vmul.f32 %v1715, %v1715
    %v1875 = vmul.f32 %v1720, %v1720
    %v1877 = vsel %vm758, 1.0, 0
    %v1880 = vsel %vm758, %v1860, 0
    %v1883 = vsel %vm758, %v1861, 0
    %v1886 = vsel %vm758, %v1862, 0
    %v1889 = vsel %vm758, %v1863, 0
    %v1892 = vsel %vm758, %v1864, 0
    %v1895 = vsel %vm758, %v1865, 0
    %v1898 = vsel %vm758, %v1866, 0
    %v1901 = vsel %vm758, %v1867, 0
    %v1904 = vsel %vm758, %v1868, 0
    %v1907 = vsel %vm758, %v1869, 0
    %v1910 = vsel %vm758, %v1870, 0
    %v1913 = vsel %vm758, %v1871, 0
    %v1916 = vsel %vm758, %v1872, 0
    %v1919 = vsel %vm758, %v1873, 0
    %v1922 = vsel %vm758, %v1874, 0
    %v1925 = vsel %vm758, %v1875, 0
    %1927 = vmatprep.subr.mxu0 0.0
    %1928 = vmatpush1.xpose.msra.mxu0 %v1925
    %1929 = vmatprep.subr.mxu0 0.0
    %1930 = vmatpush1.xpose.msra.mxu0 %v1922
    %1931 = vmatprep.subr.mxu0 0.0
    %1932 = vmatpush1.xpose.msra.mxu0 %v1919
    %1933 = vmatprep.subr.mxu0 0.0
    %1934 = vmatpush1.xpose.msra.mxu0 %v1916
    %1935 = vmatprep.subr.mxu0 0.0
    %1936 = vmatpush1.xpose.msra.mxu0 %v1913
    %1937 = vmatprep.subr.mxu0 0.0
    %1938 = vmatpush1.xpose.msra.mxu0 %v1910
    %1939 = vmatprep.subr.mxu0 0.0
    %1940 = vmatpush1.xpose.msra.mxu0 %v1907
    %1941 = vmatprep.subr.mxu0 0.0
    %1942 = vmatpush1.xpose.msra.mxu0 %v1904
    %1943 = vmatprep.subr.mxu0 0.0
    %1944 = vmatpush1.xpose.msra.mxu0 %v1901
    %1945 = vmatprep.subr.mxu0 0.0
    %1946 = vmatpush1.xpose.msra.mxu0 %v1898
    %1947 = vmatprep.subr.mxu0 0.0
    %1948 = vmatpush1.xpose.msra.mxu0 %v1895
    %1949 = vmatprep.subr.mxu0 0.0
    %1950 = vmatpush1.xpose.msra.mxu0 %v1892
    %1951 = vmatprep.subr.mxu0 0.0
    %1952 = vmatpush1.xpose.msra.mxu0 %v1889
    %1953 = vmatprep.subr.mxu0 0.0
    %1954 = vmatpush1.xpose.msra.mxu0 %v1886
    %1955 = vmatprep.subr.mxu0 0.0
    %1956 = vmatpush1.xpose.msra.mxu0 %v1883
    %1957 = vmatprep.subr.mxu0 0.0
    %1958 = vmatpush1.xpose.msra.mxu0 %v1880
    %1959 = vmatprep.subr.mxu0 0.0
    %1960 = vmatpush2.xpose.msra.mxu0 0.0
    %1961 = vmatprep.subr.mxu0 0.0
    %1962 = vmatpush2.xpose.msra.mxu0 0.0
    %1963 = vmatprep.subr.mxu0 0.0
    %1964 = vmatpush2.xpose.msra.mxu0 0.0
    %1965 = vmatprep.subr.mxu0 0.0
    %1966 = vmatpush2.xpose.msra.mxu0 0.0
    %1967 = vmatprep.subr.mxu0 0.0
    %1968 = vmatpush2.xpose.msra.mxu0 0.0
    %1969 = vmatprep.subr.mxu0 0.0
    %1970 = vmatpush2.xpose.msra.mxu0 0.0
    %1971 = vmatprep.subr.mxu0 0.0
    %1972 = vmatpush2.xpose.msra.mxu0 0.0
    %1973 = vmatprep.subr.mxu0 0.0
    %1974 = vmatpush2.xpose.msra.mxu0 0.0
    %1975 = vmatprep.subr.mxu0 0.0
    %1976 = vmatpush2.xpose.msra.mxu0 0.0
    %1977 = vmatprep.subr.mxu0 0.0
    %1978 = vmatpush2.xpose.msra.mxu0 0.0
    %1979 = vmatprep.subr.mxu0 0.0
    %1980 = vmatpush2.xpose.msra.mxu0 0.0
    %1981 = vmatprep.subr.mxu0 0.0
    %1982 = vmatpush2.xpose.msra.mxu0 0.0
    %1983 = vmatprep.subr.mxu0 0.0
    %1984 = vmatpush2.xpose.msra.mxu0 0.0
    %1985 = vmatprep.subr.mxu0 0.0
    %1986 = vmatpush2.xpose.msra.mxu0 0.0
    %1987 = vmatprep.subr.mxu0 0.0
    %1988 = vmatpush2.xpose.msra.mxu0 0.0
    %1989 = vmatprep.subr.mxu0 0.0
    %1990 = vmatpush2.xpose.msra.mxu0 0.0
    %1991 = vmatprep.mubr.f32.mxu0 0.0
    %1992 = vmatmul.mubr.f32.gmra.mxu0 %v1877
    %v1993 = vpop.f32.mrf.mxu0
    %v1994 = vadd.f32 0.0, %v1993
    %v1995 = vpop.f32.mrf.mxu0
    %1996 = vdwg.mxu0
    %v1997 = vlaneseq
    %v1998 = vshrl.u32 %v1997, 7
    %v1999 = vsub.s32 0, %v1998
    %v2000 = vrot.slane %v1994, %v1999
    %v2001 = vadd.f32 %v1856, %v2000
    %v2002 = vadd.f32 %v1859, %v2000
    %v2003 = vmul.f32 %v1844, 2.0
    %v2004 = vmul.f32 %v1849, 2.0
    %v2005 = vsub.f32 %v2001, %v2003
    %v2006 = vsub.f32 %v2002, %v2004
    %v2007 = vmax.f32 %v2005, 0.0
    %v2008 = vmax.f32 %v2006, 0.0
    %v2009 = vrsqrt.pop %v2007
    %v2010 = vmul.f32 %v2007, %v2009
    %vm2011 = vcmp.eq.f32.partialorder %v2007, inf
    %v2012 = vsel %vm2011, %v2007, %v2010
    %vm2013 = vcmp.eq.f32.partialorder %v2007, 0.0
    %v2014 = vand.u32 %v2007, 2147483648
    %v2015 = vsel %vm2013, %v2014, %v2012
    %v2016 = vrsqrt.pop %v2008
    %v2017 = vmul.f32 %v2008, %v2016
    %vm2018 = vcmp.eq.f32.partialorder %v2008, inf
    %v2019 = vsel %vm2018, %v2008, %v2017
    %vm2020 = vcmp.eq.f32.partialorder %v2008, 0.0
    %v2021 = vand.u32 %v2008, 2147483648
    %v2022 = vsel %vm2020, %v2021, %v2019
    %v2023 = vsub.f32 0.0, %v2015
    %v2024 = vsub.f32 0.0, %v2022
    %2025 = vst [vmem:[%s5] sm:$0xff] %v2023
    %2026 = vst [vmem:[%s5 + $0x8] sm:$0xff] %v2024
  $region29: #{prototypical_forward.1} parent=0 // pred_fallthru
    _
  // Predicated region
  $region30: #{prototypical_forward.1} parent=0 // pred_check
    _
  $region31: #{prototypical_forward.1} parent=0 // pred_check_branch
    %2028 = sbr.rel (0) target = $region33
  $region32: #{prototypical_forward.1} parent=0 // pred_region
    _
  $region33: #{prototypical_forward.1} parent=0 // pred_fallthru
    _
  // Predicated region
  $region34: #{prototypical_forward.1} parent=0 // pred_check
    _
  $region35: #{prototypical_forward.1} parent=0 // pred_check_branch
    %2030 = sbr.rel (0) target = $region37
  $region36: #{prototypical_forward.1} parent=0 // pred_region
    _
  $region37: #{prototypical_forward.1} parent=0 // pred_fallthru
    _

</llo_original>
